<compile_context>
chip_gen: v5e
topology: v5e:2x2
jax: 0.10.0
libtpu: 0.0.40
codegen_flags: <defaults>
</compile_context>

<pallas_src>
import jax
import jax.numpy as jnp
from jax.experimental import pallas as pl
from jax.experimental.pallas import tpu as pltpu

BN_EPS = 1e-5


def _resblock_kernel(x_ref, w1_ref, g1_ref, be1_ref,
                     w2_ref, g2_ref, be2_ref, o_ref):
    # x_ref/o_ref: (QB, N, D); w*_ref: (D, D) bf16; BN params: (1, D) f32.
    QB, N, D = x_ref.shape
    rows = QB * N

    # ---- Linear 1 on the whole (QB*N, D) slab (MXU, bf16 in, f32 acc).
    #      Linear bias omitted: cancelled exactly by the batch-stats BN mean. ----
    x_bf = x_ref[...].reshape(rows, D).astype(jnp.bfloat16)
    h = jnp.dot(x_bf, w1_ref[...], preferred_element_type=jnp.float32)
    h = h.reshape(QB, N, D)

    # ---- BatchNorm1d (per-group batch stats) folded into one scale/shift ----
    mean1 = jnp.mean(h, axis=1, keepdims=True)                          # (QB,1,D)
    var1 = jnp.maximum(
        jnp.mean(h * h, axis=1, keepdims=True) - mean1 * mean1, 0.0)    # clamp
    scale1 = g1_ref[...] * jax.lax.rsqrt(var1 + BN_EPS)
    shift1 = be1_ref[...] - mean1 * scale1
    # BN + ReLU; bf16 cast fused so no f32 activation copy survives into matmul 2.
    h = jnp.maximum(h * scale1 + shift1, 0.0).astype(jnp.bfloat16)

    # ---- Linear 2 ----
    h2 = jnp.dot(h.reshape(rows, D), w2_ref[...],
                 preferred_element_type=jnp.float32)
    h2 = h2.reshape(QB, N, D)

    # ---- BatchNorm1d folded ----
    mean2 = jnp.mean(h2, axis=1, keepdims=True)
    var2 = jnp.maximum(
        jnp.mean(h2 * h2, axis=1, keepdims=True) - mean2 * mean2, 0.0)
    scale2 = g2_ref[...] * jax.lax.rsqrt(var2 + BN_EPS)
    shift2 = be2_ref[...] - mean2 * scale2

    # ---- Residual add (re-read x from the VMEM ref; no long-lived f32 copy) ----
    x_res = x_ref[...].astype(jnp.float32)
    o_ref[...] = jnp.maximum(h2 * scale2 + shift2 + x_res, 0.0).astype(o_ref.dtype)


def _choose_group_block(q, n, target_rows=512, max_rows=2048):
    """Pick QB (a divisor of q): QB*n targets >= target_rows MXU rows, stays
    under max_rows (VMEM cap for the f32 x/out blocks), and keeps >= 2 grid
    blocks whenever q >= 2 so "parallel" can shard across v7x's 2 TensorCores."""
    divs = [d for d in range(1, q + 1) if q % d == 0]
    fitting = [d for d in divs if d * n <= max_rows] or [1]
    hitting = [d for d in fitting if d * n >= target_rows]
    qb = hitting[0] if hitting else fitting[-1]
    if q // qb < 2 and q >= 2:
        qb = max((d for d in divs if d <= q // 2), default=1)
    return qb


def residual_block_ffnns(x, params, out_dtype=None):
    """x: [Q, N, D] (Q independent per-query groups; BN stats per group) or
    [N, D] (single group). Returns the same shape in out_dtype (defaults to
    x.dtype; pass jnp.bfloat16 to halve output HBM traffic on this
    memory-bound kernel)."""
    squeeze = (x.ndim == 2)
    if squeeze:
        x = x[None]
    Q, N, D = x.shape
    out_dtype = x.dtype if out_dtype is None else out_dtype

    # Weights DMA'd / held resident as bf16 (MXU-native, half the bytes).
    w1 = params["w1"].astype(jnp.bfloat16)
    w2 = params["w2"].astype(jnp.bfloat16)
    g1, be1, g2, be2 = params["g1"], params["be1"], params["g2"], params["be2"]

    qb = _choose_group_block(Q, N)
    num_blocks = Q // qb

    xo_spec = pl.BlockSpec((qb, N, D), lambda q: (q, 0, 0))

    cost = pl.CostEstimate(
        flops=4 * Q * N * D * D,                    # two [rows,D]x[D,D] matmuls
        transcendentals=2 * Q * D,                  # rsqrt rows, two BNs/group
        bytes_accessed=(Q * N * D * (x.dtype.itemsize + jnp.dtype(out_dtype).itemsize)
                        + 2 * D * D * 2             # bf16 weights, resident (counted once)
                        + 4 * D * 4),               # BN gamma/beta
    )

    def build(single_buffer_resident):
        # Grid-invariant operands (constant index_map): stay VMEM-resident for
        # the whole grid; single-buffer them where pipeline_mode is supported
        # (double-buffering a constant operand is pure VMEM waste on v7x).
        extra = {"pipeline_mode": pl.Buffered(1)} if single_buffer_resident else {}
        w_spec = pl.BlockSpec((D, D), lambda q: (0, 0), **extra)
        p_spec = pl.BlockSpec((1, D), lambda q: (0, 0), **extra)
        return pl.pallas_call(
            _resblock_kernel,
            out_shape=jax.ShapeDtypeStruct((Q, N, D), out_dtype),
            grid=(num_blocks,),
            in_specs=[xo_spec, w_spec, p_spec, p_spec, w_spec, p_spec, p_spec],
            out_specs=xo_spec,
            compiler_params=pltpu.CompilerParams(
                dimension_semantics=("parallel",),      # groups independent
                vmem_limit_bytes=48 * 1024 * 1024),     # > 16/32 MiB defaults, < 64 MiB v7x
            cost_estimate=cost,
        )

    args = (x, w1, g1, be1, w2, g2, be2)
    try:
        out = build(True)(*args)
    except Exception:
        # Installed Pallas without BlockSpec pipeline_mode support: fall back
        # to default double-buffered resident operands (identical results).
        out = build(False)(*args)

    return out[0] if squeeze else out


def init_params(key, dim):
    """Synthetic init mirroring the module's __init__.
    Linear weights: xavier_normal (std = sqrt(2/(fan_in+fan_out))), stored
    pre-transposed as [in, out]. Linear biases: PyTorch default uniform (kept
    only for the reference; cancelled by batch-stats BN). BN: gamma=1, beta=0."""
    k1, k2, k3, k4 = jax.random.split(key, 4)
    xavier_std = (2.0 / (dim + dim)) ** 0.5
    bias_bound = 1.0 / (dim ** 0.5)
    w1 = (jax.random.normal(k1, (dim, dim), jnp.float32) * xavier_std).T
    w2 = (jax.random.normal(k2, (dim, dim), jnp.float32) * xavier_std).T
    b1 = jax.random.uniform(k3, (1, dim), jnp.float32, -bias_bound, bias_bound)
    b2 = jax.random.uniform(k4, (1, dim), jnp.float32, -bias_bound, bias_bound)
    return {
        "w1": w1, "b1": b1,
        "g1": jnp.ones((1, dim), jnp.float32), "be1": jnp.zeros((1, dim), jnp.float32),
        "w2": w2, "b2": b2,
        "g2": jnp.ones((1, dim), jnp.float32), "be2": jnp.zeros((1, dim), jnp.float32),
    }


def _reference(x, p):
    """Pure-JAX reference (per-group BN over axis -2). Mirrors the kernel's
    bf16 matmul operands but KEEPS the Linear biases — they are mathematically
    cancelled by batch-stats BN, which validates dropping them in the kernel."""
    def dot(a, w):
        return jnp.dot(a.astype(jnp.bfloat16), w.astype(jnp.bfloat16),
                       preferred_element_type=jnp.float32)

    h = dot(x, p["w1"]) + p["b1"]
    m = h.mean(axis=-2, keepdims=True)
    v = ((h - m) ** 2).mean(axis=-2, keepdims=True)
    h = (h - m) * jax.lax.rsqrt(v + BN_EPS) * p["g1"] + p["be1"]
    h = jnp.maximum(h, 0.0)

    h2 = dot(h, p["w2"]) + p["b2"]
    m2 = h2.mean(axis=-2, keepdims=True)
    v2 = ((h2 - m2) ** 2).mean(axis=-2, keepdims=True)
    h2 = (h2 - m2) * jax.lax.rsqrt(v2 + BN_EPS) * p["g2"] + p["be2"]
    return jnp.maximum(h2 + x, 0.0)


if __name__ == "__main__":
    key = jax.random.PRNGKey(0)
    kx, kp = jax.random.split(key)

    # Small but lane-dense shapes: 4 query groups x 16 documents x dim 128.
    # QB selection gives 2 groups per block -> grid of 2 "parallel" steps.
    Q, N, D = 4, 16, 128
    x = jax.random.normal(kx, (Q, N, D), jnp.float32)
    params = init_params(kp, D)

    out = residual_block_ffnns(x, params)
    out = jax.block_until_ready(out)

    ref = _reference(x, params)
    assert out.shape == (Q, N, D)
    assert out.dtype == x.dtype
    assert jnp.allclose(out, ref, atol=2e-3, rtol=2e-3), (
        float(jnp.max(jnp.abs(out - ref))))

    print("KERNEL_OK")
</pallas_src>

<mosaic_0001>
module attributes {stable_mosaic.version = 11 : i64} {
  func.func @_resblock_kernel(%arg0: i32, %arg1: memref<2x16x128xf32, #tpu.memory_space<vmem>>, %arg2: memref<128x128xbf16, #tpu.memory_space<vmem>>, %arg3: memref<1x128xf32, #tpu.memory_space<vmem>>, %arg4: memref<1x128xf32, #tpu.memory_space<vmem>>, %arg5: memref<128x128xbf16, #tpu.memory_space<vmem>>, %arg6: memref<1x128xf32, #tpu.memory_space<vmem>>, %arg7: memref<1x128xf32, #tpu.memory_space<vmem>>, %arg8: memref<2x16x128xf32, #tpu.memory_space<vmem>>) attributes {dimension_semantics = [#tpu.dimension_semantics<parallel>], iteration_bounds = array<i64: 2>, scalar_prefetch = 0 : i64, scratch_operands = 0 : i64, tpu.core_type = #tpu.core_type<tc>, window_params = [{transform_indices = @transform_0, window_bounds = array<i64: 2, 16, 128>}, {pipeline_mode = #tpu.pipeline_mode<synchronous>, transform_indices = @transform_1, window_bounds = array<i64: 128, 128>}, {pipeline_mode = #tpu.pipeline_mode<synchronous>, transform_indices = @transform_2, window_bounds = array<i64: 1, 128>}, {pipeline_mode = #tpu.pipeline_mode<synchronous>, transform_indices = @transform_3, window_bounds = array<i64: 1, 128>}, {pipeline_mode = #tpu.pipeline_mode<synchronous>, transform_indices = @transform_4, window_bounds = array<i64: 128, 128>}, {pipeline_mode = #tpu.pipeline_mode<synchronous>, transform_indices = @transform_5, window_bounds = array<i64: 1, 128>}, {pipeline_mode = #tpu.pipeline_mode<synchronous>, transform_indices = @transform_6, window_bounds = array<i64: 1, 128>}, {transform_indices = @transform_7, window_bounds = array<i64: 2, 16, 128>}]} {
    %c0 = arith.constant 0 : index
    %c0_0 = arith.constant 0 : index
    %c0_1 = arith.constant 0 : index
    %0 = vector.load %arg1[%c0, %c0_0, %c0_1] : memref<2x16x128xf32, #tpu.memory_space<vmem>>, vector<2x16x128xf32>
    %1 = vector.shape_cast %0 : vector<2x16x128xf32> to vector<32x128xf32>
    %2 = arith.truncf %1 : vector<32x128xf32> to vector<32x128xbf16>
    %c0_2 = arith.constant 0 : index
    %c0_3 = arith.constant 0 : index
    %3 = vector.load %arg2[%c0_2, %c0_3] : memref<128x128xbf16, #tpu.memory_space<vmem>>, vector<128x128xbf16>
    %cst = arith.constant dense<0.000000e+00> : vector<32x128xf32>
    %4 = tpu.matmul %2, %3, %cst {dimension_numbers = #tpu.dot_dimension_numbers<[1], [0], [0], [1], [0, 0, 1, 1], [], []>} : vector<32x128xbf16>, vector<128x128xbf16>, vector<32x128xf32> -> vector<32x128xf32>
    %5 = vector.shape_cast %4 : vector<32x128xf32> to vector<2x16x128xf32>
    %cst_4 = arith.constant dense<0.000000e+00> : vector<2x128xf32>
    %6 = vector.multi_reduction <add>, %5, %cst_4 [1] : vector<2x16x128xf32> to vector<2x128xf32>
    %7 = vector.shape_cast %6 : vector<2x128xf32> to vector<2x1x128xf32>
    %cst_5 = arith.constant 1.600000e+01 : f32
    %8 = vector.broadcast %cst_5 : f32 to vector<2x1x128xf32>
    %9 = arith.divf %7, %8 : vector<2x1x128xf32>
    %10 = arith.mulf %5, %5 : vector<2x16x128xf32>
    %cst_6 = arith.constant dense<0.000000e+00> : vector<2x128xf32>
    %11 = vector.multi_reduction <add>, %10, %cst_6 [1] : vector<2x16x128xf32> to vector<2x128xf32>
    %12 = vector.shape_cast %11 : vector<2x128xf32> to vector<2x1x128xf32>
    %cst_7 = arith.constant 1.600000e+01 : f32
    %13 = vector.broadcast %cst_7 : f32 to vector<2x1x128xf32>
    %14 = arith.divf %12, %13 : vector<2x1x128xf32>
    %15 = arith.mulf %9, %9 : vector<2x1x128xf32>
    %16 = arith.subf %14, %15 : vector<2x1x128xf32>
    %cst_8 = arith.constant 0.000000e+00 : f32
    %17 = vector.broadcast %cst_8 : f32 to vector<2x1x128xf32>
    %18 = arith.maximumf %16, %17 : vector<2x1x128xf32>
    %c0_9 = arith.constant 0 : index
    %c0_10 = arith.constant 0 : index
    %19 = vector.load %arg3[%c0_9, %c0_10] : memref<1x128xf32, #tpu.memory_space<vmem>>, vector<1x128xf32>
    %cst_11 = arith.constant 9.99999974E-6 : f32
    %20 = vector.broadcast %cst_11 : f32 to vector<2x1x128xf32>
    %21 = arith.addf %18, %20 : vector<2x1x128xf32>
    %22 = math.rsqrt %21 : vector<2x1x128xf32>
    %23 = vector.shape_cast %19 : vector<1x128xf32> to vector<1x1x128xf32>
    %24 = vector.broadcast %23 : vector<1x1x128xf32> to vector<2x1x128xf32>
    %25 = arith.mulf %24, %22 : vector<2x1x128xf32>
    %c0_12 = arith.constant 0 : index
    %c0_13 = arith.constant 0 : index
    %26 = vector.load %arg4[%c0_12, %c0_13] : memref<1x128xf32, #tpu.memory_space<vmem>>, vector<1x128xf32>
    %27 = arith.mulf %9, %25 : vector<2x1x128xf32>
    %28 = vector.shape_cast %26 : vector<1x128xf32> to vector<1x1x128xf32>
    %29 = vector.broadcast %28 : vector<1x1x128xf32> to vector<2x1x128xf32>
    %30 = arith.subf %29, %27 : vector<2x1x128xf32>
    %31 = vector.broadcast %25 : vector<2x1x128xf32> to vector<2x16x128xf32>
    %32 = arith.mulf %5, %31 : vector<2x16x128xf32>
    %33 = vector.broadcast %30 : vector<2x1x128xf32> to vector<2x16x128xf32>
    %34 = arith.addf %32, %33 : vector<2x16x128xf32>
    %cst_14 = arith.constant 0.000000e+00 : f32
    %35 = vector.broadcast %cst_14 : f32 to vector<2x16x128xf32>
    %36 = arith.maximumf %34, %35 : vector<2x16x128xf32>
    %37 = arith.truncf %36 : vector<2x16x128xf32> to vector<2x16x128xbf16>
    %38 = vector.shape_cast %37 : vector<2x16x128xbf16> to vector<32x128xbf16>
    %c0_15 = arith.constant 0 : index
    %c0_16 = arith.constant 0 : index
    %39 = vector.load %arg5[%c0_15, %c0_16] : memref<128x128xbf16, #tpu.memory_space<vmem>>, vector<128x128xbf16>
    %cst_17 = arith.constant dense<0.000000e+00> : vector<32x128xf32>
    %40 = tpu.matmul %38, %39, %cst_17 {dimension_numbers = #tpu.dot_dimension_numbers<[1], [0], [0], [1], [0, 0, 1, 1], [], []>} : vector<32x128xbf16>, vector<128x128xbf16>, vector<32x128xf32> -> vector<32x128xf32>
    %41 = vector.shape_cast %40 : vector<32x128xf32> to vector<2x16x128xf32>
    %cst_18 = arith.constant dense<0.000000e+00> : vector<2x128xf32>
    %42 = vector.multi_reduction <add>, %41, %cst_18 [1] : vector<2x16x128xf32> to vector<2x128xf32>
    %43 = vector.shape_cast %42 : vector<2x128xf32> to vector<2x1x128xf32>
    %cst_19 = arith.constant 1.600000e+01 : f32
    %44 = vector.broadcast %cst_19 : f32 to vector<2x1x128xf32>
    %45 = arith.divf %43, %44 : vector<2x1x128xf32>
    %46 = arith.mulf %41, %41 : vector<2x16x128xf32>
    %cst_20 = arith.constant dense<0.000000e+00> : vector<2x128xf32>
    %47 = vector.multi_reduction <add>, %46, %cst_20 [1] : vector<2x16x128xf32> to vector<2x128xf32>
    %48 = vector.shape_cast %47 : vector<2x128xf32> to vector<2x1x128xf32>
    %cst_21 = arith.constant 1.600000e+01 : f32
    %49 = vector.broadcast %cst_21 : f32 to vector<2x1x128xf32>
    %50 = arith.divf %48, %49 : vector<2x1x128xf32>
    %51 = arith.mulf %45, %45 : vector<2x1x128xf32>
    %52 = arith.subf %50, %51 : vector<2x1x128xf32>
    %cst_22 = arith.constant 0.000000e+00 : f32
    %53 = vector.broadcast %cst_22 : f32 to vector<2x1x128xf32>
    %54 = arith.maximumf %52, %53 : vector<2x1x128xf32>
    %c0_23 = arith.constant 0 : index
    %c0_24 = arith.constant 0 : index
    %55 = vector.load %arg6[%c0_23, %c0_24] : memref<1x128xf32, #tpu.memory_space<vmem>>, vector<1x128xf32>
    %cst_25 = arith.constant 9.99999974E-6 : f32
    %56 = vector.broadcast %cst_25 : f32 to vector<2x1x128xf32>
    %57 = arith.addf %54, %56 : vector<2x1x128xf32>
    %58 = math.rsqrt %57 : vector<2x1x128xf32>
    %59 = vector.shape_cast %55 : vector<1x128xf32> to vector<1x1x128xf32>
    %60 = vector.broadcast %59 : vector<1x1x128xf32> to vector<2x1x128xf32>
    %61 = arith.mulf %60, %58 : vector<2x1x128xf32>
    %c0_26 = arith.constant 0 : index
    %c0_27 = arith.constant 0 : index
    %62 = vector.load %arg7[%c0_26, %c0_27] : memref<1x128xf32, #tpu.memory_space<vmem>>, vector<1x128xf32>
    %63 = arith.mulf %45, %61 : vector<2x1x128xf32>
    %64 = vector.shape_cast %62 : vector<1x128xf32> to vector<1x1x128xf32>
    %65 = vector.broadcast %64 : vector<1x1x128xf32> to vector<2x1x128xf32>
    %66 = arith.subf %65, %63 : vector<2x1x128xf32>
    %c0_28 = arith.constant 0 : index
    %c0_29 = arith.constant 0 : index
    %c0_30 = arith.constant 0 : index
    %67 = vector.load %arg1[%c0_28, %c0_29, %c0_30] : memref<2x16x128xf32, #tpu.memory_space<vmem>>, vector<2x16x128xf32>
    %68 = vector.broadcast %61 : vector<2x1x128xf32> to vector<2x16x128xf32>
    %69 = arith.mulf %41, %68 : vector<2x16x128xf32>
    %70 = vector.broadcast %66 : vector<2x1x128xf32> to vector<2x16x128xf32>
    %71 = arith.addf %69, %70 : vector<2x16x128xf32>
    %72 = arith.addf %71, %67 : vector<2x16x128xf32>
    %cst_31 = arith.constant 0.000000e+00 : f32
    %73 = vector.broadcast %cst_31 : f32 to vector<2x16x128xf32>
    %74 = arith.maximumf %72, %73 : vector<2x16x128xf32>
    %c0_32 = arith.constant 0 : index
    %c0_33 = arith.constant 0 : index
    %c0_34 = arith.constant 0 : index
    %75 = vector.load %arg8[%c0_32, %c0_33, %c0_34] : memref<2x16x128xf32, #tpu.memory_space<vmem>>, vector<2x16x128xf32>
    tpu.vector_store %arg8[%c0_32, %c0_33, %c0_34], %74 {strides = array<i32>} : memref<2x16x128xf32, #tpu.memory_space<vmem>>, vector<2x16x128xf32>,
    return
  }
  func.func @transform_0(%arg0: i32) -> (i32, i32, i32) {
    %c0_i32 = arith.constant 0 : i32
    %c0_i32_0 = arith.constant 0 : i32
    %c0_i32_1 = arith.constant 0 : i32
    return %arg0, %c0_i32, %c0_i32_0 : i32, i32, i32
  }
  func.func @transform_1(%arg0: i32) -> (i32, i32) {
    %c0_i32 = arith.constant 0 : i32
    %c0_i32_0 = arith.constant 0 : i32
    %c0_i32_1 = arith.constant 0 : i32
    return %c0_i32, %c0_i32_0 : i32, i32
  }
  func.func @transform_2(%arg0: i32) -> (i32, i32) {
    %c0_i32 = arith.constant 0 : i32
    %c0_i32_0 = arith.constant 0 : i32
    %c0_i32_1 = arith.constant 0 : i32
    return %c0_i32, %c0_i32_0 : i32, i32
  }
  func.func @transform_3(%arg0: i32) -> (i32, i32) {
    %c0_i32 = arith.constant 0 : i32
    %c0_i32_0 = arith.constant 0 : i32
    %c0_i32_1 = arith.constant 0 : i32
    return %c0_i32, %c0_i32_0 : i32, i32
  }
  func.func @transform_4(%arg0: i32) -> (i32, i32) {
    %c0_i32 = arith.constant 0 : i32
    %c0_i32_0 = arith.constant 0 : i32
    %c0_i32_1 = arith.constant 0 : i32
    return %c0_i32, %c0_i32_0 : i32, i32
  }
  func.func @transform_5(%arg0: i32) -> (i32, i32) {
    %c0_i32 = arith.constant 0 : i32
    %c0_i32_0 = arith.constant 0 : i32
    %c0_i32_1 = arith.constant 0 : i32
    return %c0_i32, %c0_i32_0 : i32, i32
  }
  func.func @transform_6(%arg0: i32) -> (i32, i32) {
    %c0_i32 = arith.constant 0 : i32
    %c0_i32_0 = arith.constant 0 : i32
    %c0_i32_1 = arith.constant 0 : i32
    return %c0_i32, %c0_i32_0 : i32, i32
  }
  func.func @transform_7(%arg0: i32) -> (i32, i32, i32) {
    %c0_i32 = arith.constant 0 : i32
    %c0_i32_0 = arith.constant 0 : i32
    %c0_i32_1 = arith.constant 0 : i32
    return %arg0, %c0_i32, %c0_i32_0 : i32, i32, i32
  }
}

module attributes {stable_mosaic.version = 11 : i64} {
  func.func @_resblock_kernel(%arg0: i32, %arg1: memref<2x16x128xf32, #tpu.memory_space<vmem>>, %arg2: memref<128x128xbf16, #tpu.memory_space<vmem>>, %arg3: memref<1x128xf32, #tpu.memory_space<vmem>>, %arg4: memref<1x128xf32, #tpu.memory_space<vmem>>, %arg5: memref<128x128xbf16, #tpu.memory_space<vmem>>, %arg6: memref<1x128xf32, #tpu.memory_space<vmem>>, %arg7: memref<1x128xf32, #tpu.memory_space<vmem>>, %arg8: memref<2x16x128xf32, #tpu.memory_space<vmem>>) attributes {dimension_semantics = [#tpu.dimension_semantics<parallel>], iteration_bounds = array<i64: 2>, scalar_prefetch = 0 : i64, scratch_operands = 0 : i64, tpu.core_type = #tpu.core_type<tc>, window_params = [{transform_indices = @transform_0, window_bounds = array<i64: 2, 16, 128>}, {pipeline_mode = #tpu.pipeline_mode<synchronous>, transform_indices = @transform_1, window_bounds = array<i64: 128, 128>}, {pipeline_mode = #tpu.pipeline_mode<synchronous>, transform_indices = @transform_2, window_bounds = array<i64: 1, 128>}, {pipeline_mode = #tpu.pipeline_mode<synchronous>, transform_indices = @transform_3, window_bounds = array<i64: 1, 128>}, {pipeline_mode = #tpu.pipeline_mode<synchronous>, transform_indices = @transform_4, window_bounds = array<i64: 128, 128>}, {pipeline_mode = #tpu.pipeline_mode<synchronous>, transform_indices = @transform_5, window_bounds = array<i64: 1, 128>}, {pipeline_mode = #tpu.pipeline_mode<synchronous>, transform_indices = @transform_6, window_bounds = array<i64: 1, 128>}, {transform_indices = @transform_7, window_bounds = array<i64: 2, 16, 128>}]} {
    %c0 = arith.constant 0 : index
    %c0_0 = arith.constant 0 : index
    %c0_1 = arith.constant 0 : index
    %0 = vector.load %arg1[%c0, %c0_0, %c0_1] : memref<2x16x128xf32, #tpu.memory_space<vmem>>, vector<2x16x128xf32>
    %1 = vector.shape_cast %0 : vector<2x16x128xf32> to vector<32x128xf32>
    %2 = arith.truncf %1 : vector<32x128xf32> to vector<32x128xbf16>
    %c0_2 = arith.constant 0 : index
    %c0_3 = arith.constant 0 : index
    %3 = vector.load %arg2[%c0_2, %c0_3] : memref<128x128xbf16, #tpu.memory_space<vmem>>, vector<128x128xbf16>
    %cst = arith.constant dense<0.000000e+00> : vector<32x128xf32>
    %4 = tpu.matmul %2, %3, %cst {dimension_numbers = #tpu.dot_dimension_numbers<[1], [0], [0], [1], [0, 0, 1, 1], [], []>} : vector<32x128xbf16>, vector<128x128xbf16>, vector<32x128xf32> -> vector<32x128xf32>
    %5 = vector.shape_cast %4 : vector<32x128xf32> to vector<2x16x128xf32>
    %cst_4 = arith.constant dense<0.000000e+00> : vector<2x128xf32>
    %6 = vector.multi_reduction <add>, %5, %cst_4 [1] : vector<2x16x128xf32> to vector<2x128xf32>
    %7 = vector.shape_cast %6 : vector<2x128xf32> to vector<2x1x128xf32>
    %cst_5 = arith.constant 1.600000e+01 : f32
    %8 = vector.broadcast %cst_5 : f32 to vector<2x1x128xf32>
    %9 = arith.divf %7, %8 : vector<2x1x128xf32>
    %10 = arith.mulf %5, %5 : vector<2x16x128xf32>
    %cst_6 = arith.constant dense<0.000000e+00> : vector<2x128xf32>
    %11 = vector.multi_reduction <add>, %10, %cst_6 [1] : vector<2x16x128xf32> to vector<2x128xf32>
    %12 = vector.shape_cast %11 : vector<2x128xf32> to vector<2x1x128xf32>
    %cst_7 = arith.constant 1.600000e+01 : f32
    %13 = vector.broadcast %cst_7 : f32 to vector<2x1x128xf32>
    %14 = arith.divf %12, %13 : vector<2x1x128xf32>
    %15 = arith.mulf %9, %9 : vector<2x1x128xf32>
    %16 = arith.subf %14, %15 : vector<2x1x128xf32>
    %cst_8 = arith.constant 0.000000e+00 : f32
    %17 = vector.broadcast %cst_8 : f32 to vector<2x1x128xf32>
    %18 = arith.maximumf %16, %17 : vector<2x1x128xf32>
    %c0_9 = arith.constant 0 : index
    %c0_10 = arith.constant 0 : index
    %19 = vector.load %arg3[%c0_9, %c0_10] : memref<1x128xf32, #tpu.memory_space<vmem>>, vector<1x128xf32>
    %cst_11 = arith.constant 9.99999974E-6 : f32
    %20 = vector.broadcast %cst_11 : f32 to vector<2x1x128xf32>
    %21 = arith.addf %18, %20 : vector<2x1x128xf32>
    %22 = math.rsqrt %21 : vector<2x1x128xf32>
    %23 = vector.shape_cast %19 : vector<1x128xf32> to vector<1x1x128xf32>
    %24 = vector.broadcast %23 : vector<1x1x128xf32> to vector<2x1x128xf32>
    %25 = arith.mulf %24, %22 : vector<2x1x128xf32>
    %c0_12 = arith.constant 0 : index
    %c0_13 = arith.constant 0 : index
    %26 = vector.load %arg4[%c0_12, %c0_13] : memref<1x128xf32, #tpu.memory_space<vmem>>, vector<1x128xf32>
    %27 = arith.mulf %9, %25 : vector<2x1x128xf32>
    %28 = vector.shape_cast %26 : vector<1x128xf32> to vector<1x1x128xf32>
    %29 = vector.broadcast %28 : vector<1x1x128xf32> to vector<2x1x128xf32>
    %30 = arith.subf %29, %27 : vector<2x1x128xf32>
    %31 = vector.broadcast %25 : vector<2x1x128xf32> to vector<2x16x128xf32>
    %32 = arith.mulf %5, %31 : vector<2x16x128xf32>
    %33 = vector.broadcast %30 : vector<2x1x128xf32> to vector<2x16x128xf32>
    %34 = arith.addf %32, %33 : vector<2x16x128xf32>
    %cst_14 = arith.constant 0.000000e+00 : f32
    %35 = vector.broadcast %cst_14 : f32 to vector<2x16x128xf32>
    %36 = arith.maximumf %34, %35 : vector<2x16x128xf32>
    %37 = arith.truncf %36 : vector<2x16x128xf32> to vector<2x16x128xbf16>
    %38 = vector.shape_cast %37 : vector<2x16x128xbf16> to vector<32x128xbf16>
    %c0_15 = arith.constant 0 : index
    %c0_16 = arith.constant 0 : index
    %39 = vector.load %arg5[%c0_15, %c0_16] : memref<128x128xbf16, #tpu.memory_space<vmem>>, vector<128x128xbf16>
    %cst_17 = arith.constant dense<0.000000e+00> : vector<32x128xf32>
    %40 = tpu.matmul %38, %39, %cst_17 {dimension_numbers = #tpu.dot_dimension_numbers<[1], [0], [0], [1], [0, 0, 1, 1], [], []>} : vector<32x128xbf16>, vector<128x128xbf16>, vector<32x128xf32> -> vector<32x128xf32>
    %41 = vector.shape_cast %40 : vector<32x128xf32> to vector<2x16x128xf32>
    %cst_18 = arith.constant dense<0.000000e+00> : vector<2x128xf32>
    %42 = vector.multi_reduction <add>, %41, %cst_18 [1] : vector<2x16x128xf32> to vector<2x128xf32>
    %43 = vector.shape_cast %42 : vector<2x128xf32> to vector<2x1x128xf32>
    %cst_19 = arith.constant 1.600000e+01 : f32
    %44 = vector.broadcast %cst_19 : f32 to vector<2x1x128xf32>
    %45 = arith.divf %43, %44 : vector<2x1x128xf32>
    %46 = arith.mulf %41, %41 : vector<2x16x128xf32>
    %cst_20 = arith.constant dense<0.000000e+00> : vector<2x128xf32>
    %47 = vector.multi_reduction <add>, %46, %cst_20 [1] : vector<2x16x128xf32> to vector<2x128xf32>
    %48 = vector.shape_cast %47 : vector<2x128xf32> to vector<2x1x128xf32>
    %cst_21 = arith.constant 1.600000e+01 : f32
    %49 = vector.broadcast %cst_21 : f32 to vector<2x1x128xf32>
    %50 = arith.divf %48, %49 : vector<2x1x128xf32>
    %51 = arith.mulf %45, %45 : vector<2x1x128xf32>
    %52 = arith.subf %50, %51 : vector<2x1x128xf32>
    %cst_22 = arith.constant 0.000000e+00 : f32
    %53 = vector.broadcast %cst_22 : f32 to vector<2x1x128xf32>
    %54 = arith.maximumf %52, %53 : vector<2x1x128xf32>
    %c0_23 = arith.constant 0 : index
    %c0_24 = arith.constant 0 : index
    %55 = vector.load %arg6[%c0_23, %c0_24] : memref<1x128xf32, #tpu.memory_space<vmem>>, vector<1x128xf32>
    %cst_25 = arith.constant 9.99999974E-6 : f32
    %56 = vector.broadcast %cst_25 : f32 to vector<2x1x128xf32>
    %57 = arith.addf %54, %56 : vector<2x1x128xf32>
    %58 = math.rsqrt %57 : vector<2x1x128xf32>
    %59 = vector.shape_cast %55 : vector<1x128xf32> to vector<1x1x128xf32>
    %60 = vector.broadcast %59 : vector<1x1x128xf32> to vector<2x1x128xf32>
    %61 = arith.mulf %60, %58 : vector<2x1x128xf32>
    %c0_26 = arith.constant 0 : index
    %c0_27 = arith.constant 0 : index
    %62 = vector.load %arg7[%c0_26, %c0_27] : memref<1x128xf32, #tpu.memory_space<vmem>>, vector<1x128xf32>
    %63 = arith.mulf %45, %61 : vector<2x1x128xf32>
    %64 = vector.shape_cast %62 : vector<1x128xf32> to vector<1x1x128xf32>
    %65 = vector.broadcast %64 : vector<1x1x128xf32> to vector<2x1x128xf32>
    %66 = arith.subf %65, %63 : vector<2x1x128xf32>
    %c0_28 = arith.constant 0 : index
    %c0_29 = arith.constant 0 : index
    %c0_30 = arith.constant 0 : index
    %67 = vector.load %arg1[%c0_28, %c0_29, %c0_30] : memref<2x16x128xf32, #tpu.memory_space<vmem>>, vector<2x16x128xf32>
    %68 = vector.broadcast %61 : vector<2x1x128xf32> to vector<2x16x128xf32>
    %69 = arith.mulf %41, %68 : vector<2x16x128xf32>
    %70 = vector.broadcast %66 : vector<2x1x128xf32> to vector<2x16x128xf32>
    %71 = arith.addf %69, %70 : vector<2x16x128xf32>
    %72 = arith.addf %71, %67 : vector<2x16x128xf32>
    %cst_31 = arith.constant 0.000000e+00 : f32
    %73 = vector.broadcast %cst_31 : f32 to vector<2x16x128xf32>
    %74 = arith.maximumf %72, %73 : vector<2x16x128xf32>
    %c0_32 = arith.constant 0 : index
    %c0_33 = arith.constant 0 : index
    %c0_34 = arith.constant 0 : index
    %75 = vector.load %arg8[%c0_32, %c0_33, %c0_34] : memref<2x16x128xf32, #tpu.memory_space<vmem>>, vector<2x16x128xf32>
    tpu.vector_store %arg8[%c0_32, %c0_33, %c0_34], %74 {strides = array<i32>} : memref<2x16x128xf32, #tpu.memory_space<vmem>>, vector<2x16x128xf32>,
    return
  }
  func.func @transform_0(%arg0: i32) -> (i32, i32, i32) {
    %c0_i32 = arith.constant 0 : i32
    %c0_i32_0 = arith.constant 0 : i32
    %c0_i32_1 = arith.constant 0 : i32
    return %arg0, %c0_i32, %c0_i32_0 : i32, i32, i32
  }
  func.func @transform_1(%arg0: i32) -> (i32, i32) {
    %c0_i32 = arith.constant 0 : i32
    %c0_i32_0 = arith.constant 0 : i32
    %c0_i32_1 = arith.constant 0 : i32
    return %c0_i32, %c0_i32_0 : i32, i32
  }
  func.func @transform_2(%arg0: i32) -> (i32, i32) {
    %c0_i32 = arith.constant 0 : i32
    %c0_i32_0 = arith.constant 0 : i32
    %c0_i32_1 = arith.constant 0 : i32
    return %c0_i32, %c0_i32_0 : i32, i32
  }
  func.func @transform_3(%arg0: i32) -> (i32, i32) {
    %c0_i32 = arith.constant 0 : i32
    %c0_i32_0 = arith.constant 0 : i32
    %c0_i32_1 = arith.constant 0 : i32
    return %c0_i32, %c0_i32_0 : i32, i32
  }
  func.func @transform_4(%arg0: i32) -> (i32, i32) {
    %c0_i32 = arith.constant 0 : i32
    %c0_i32_0 = arith.constant 0 : i32
    %c0_i32_1 = arith.constant 0 : i32
    return %c0_i32, %c0_i32_0 : i32, i32
  }
  func.func @transform_5(%arg0: i32) -> (i32, i32) {
    %c0_i32 = arith.constant 0 : i32
    %c0_i32_0 = arith.constant 0 : i32
    %c0_i32_1 = arith.constant 0 : i32
    return %c0_i32, %c0_i32_0 : i32, i32
  }
  func.func @transform_6(%arg0: i32) -> (i32, i32) {
    %c0_i32 = arith.constant 0 : i32
    %c0_i32_0 = arith.constant 0 : i32
    %c0_i32_1 = arith.constant 0 : i32
    return %c0_i32, %c0_i32_0 : i32, i32
  }
  func.func @transform_7(%arg0: i32) -> (i32, i32, i32) {
    %c0_i32 = arith.constant 0 : i32
    %c0_i32_0 = arith.constant 0 : i32
    %c0_i32_1 = arith.constant 0 : i32
    return %arg0, %c0_i32, %c0_i32_0 : i32, i32, i32
  }
}

</mosaic_0001>

<llo_original>
// kernel: tpu_custom_call.1
$region0: #{tpu_custom_call.1}
  #allocation0 [shape = 'u32[]', space=smem, size = 0x4, offset = 0x4, fixed_abs, tag = 'smem constant byte address 0x4 - core index']
  #allocation1 [shape = 'u32[72,128]{1,0:T(1,128)}', space=vmem, size = 0x9000, scoped, tag = 'internal scratch']
  %s0 = inlined_call_operand.hbm [shape: f32[4,16,128], index: 0, kind: input, shape index: {}]
  %s1 = inlined_call_operand.hbm [shape: bf16[128,128], index: 1, kind: input, shape index: {}]
  %s2 = inlined_call_operand.vmem [shape: f32[1,128], index: 2, kind: input, shape index: {}]
  %s3 = inlined_call_operand.vmem [shape: f32[1,128], index: 3, kind: input, shape index: {}]
  %s4 = inlined_call_operand.hbm [shape: bf16[128,128], index: 4, kind: input, shape index: {}]
  %s5 = inlined_call_operand.vmem [shape: f32[1,128], index: 5, kind: input, shape index: {}]
  %s6 = inlined_call_operand.vmem [shape: f32[1,128], index: 6, kind: input, shape index: {}]
  %s7 = inlined_call_operand.hbm [shape: f32[4,16,128], index: 7, kind: output, shape index: {}]
  %s8 = sld [smem:[#allocation0]]
  $region73: #{tpu_custom_call.1} parent=0
    _
  %s10 = ssub.s32 1, %s8
  %s11 = scalar_select 0, %s10, %s8
  $region1: #{tpu_custom_call.1} parent=0
    #allocation2 [shape = 'u8[32768]{0}', space=vmem, size = 0x8000, scoped, tag = 'input window, operand 0']
    #allocation3 [shape = 's32[2]{0}', space=sflag, size = 0x8, scoped, tag = 'scoped memory for tpu_custom_call.1']
    #allocation4 [shape = 's32[2]{0}', space=sflag, size = 0x8, scoped, tag = 'scoped memory for tpu_custom_call.1']
    #allocation5 [shape = 'u8[32768]{0}', space=vmem, size = 0x8000, scoped, tag = 'input window, operand 1, single buffered']
    #allocation6 [shape = 's32[1]{0}', space=sflag, size = 0x4, scoped, tag = 'scoped memory for tpu_custom_call.1']
    #allocation7 [shape = 'u8[32768]{0}', space=vmem, size = 0x8000, scoped, tag = 'input window, operand 4, single buffered']
    #allocation8 [shape = 'u8[32768]{0}', space=vmem, size = 0x8000, scoped, tag = 'output window, operand 0']
    %12 = vsyncpa [#allocation3], 0
    %s13 = scalar_lea.sflag [#allocation3], 1
    %14 = vsyncpa %s13, 0
    %15 = vsyncpa [#allocation6], 0
    %16 = vsyncpa [#allocation4], 0
    %s17 = scalar_lea.sflag [#allocation4], 1
    %18 = vsyncpa %s17, 0
    loop: start=0, step=1, limit=4
    $region2: #{tpu_custom_call.1} parent=1 // loop_pre_header
      _
    $region3: #{tpu_custom_call.1} parent=1 // loop_header
      %s20 = sphi 0, %s24
      %p21 = scmp.ge.s32.totalorder %s20, 4
      %s30 = sphi 0, %s32
      %s33 = sphi 0, %s30
      %s34 = sphi 0, %s33
      %s50 = sphi 0, %s34
      %s54 = sphi 0, %s54
      %s56 = sphi 0, %s54
      %s57 = sphi 0, %s56
      %s71 = sphi 0, %s57
      %s75 = sphi 0, %s75
      %s77 = sphi 0, %s75
      %s78 = sphi 0, %s77
      %s92 = sphi 0, %s78
      %s96 = sphi 0, %s96
      %s98 = sphi 0, %s96
      %s99 = sphi 0, %s98
      %s113 = sphi 0, %s99
      %s117 = sphi 0, %s117
      %s119 = sphi 0, %s117
      %s120 = sphi 0, %s119
      %s134 = sphi 0, %s120
      %s138 = sphi 0, %s138
      %s140 = sphi 0, %s138
      %s141 = sphi 0, %s140
      %s155 = sphi 0, %s141
      %s159 = sphi 0, %s159
      %s161 = sphi 0, %s159
      %s162 = sphi 0, %s161
      %s176 = sphi 0, %s162
      %s182 = sphi 0, %s184
      %s185 = sphi 0, %s182
      %s186 = sphi 0, %s185
      %s202 = sphi 0, %s186
    $region4: #{tpu_custom_call.1} parent=1 // loop_header_branch
      %23 = sbr.rel (%p21) target = $region8
    $region5: #{tpu_custom_call.1} parent=1 // loop_body
      %s25 = ssub.s32 %s20, 1
      %s26 = ssub.s32 %s20, 2
      %s27 = sadd.s32 %s20, 1
      %s28 = ssub.s32 %s20, %s27
      %p29 = scmp.eq.s32.totalorder %s28, 0
      %s31 = sadd.s32 %s30, 1
      %s32 = scalar_select %p29, %s30, %s31
      %p35 = pneg %p29
      %p36 = scmp.eq.s32.totalorder %s20, 1
      %p37 = por %p35, %p36
      %p38 = scmp.ne.s32.totalorder %s30, %s33
      %p39 = scmp.eq.s32.totalorder %s20, 0
      %p40 = por %p38, %p39
      %p41 = scmp.ne.s32.totalorder %s30, %s33
      %p42 = scmp.eq.s32.totalorder %s25, 1
      %p43 = por %p41, %p42
      %p44 = scmp.ne.s32.totalorder %s33, %s34
      %p45 = scmp.eq.s32.totalorder %s25, 0
      %p46 = por %p44, %p45
      %p47 = scmp.ne.s32.totalorder %s33, %s34
      %p48 = scmp.eq.s32.totalorder %s26, 1
      %p49 = por %p47, %p48
      %p51 = scmp.ne.s32.totalorder %s34, %s50
      %p52 = scmp.eq.s32.totalorder %s26, 0
      %p53 = por %p51, %p52
      %s55 = sadd.s32 %s54, 1
      %p58 = scmp.eq.s32.totalorder %s20, 1
      %p59 = scmp.ne.s32.totalorder %s54, %s56
      %p60 = scmp.eq.s32.totalorder %s20, 0
      %p61 = por %p59, %p60
      %p62 = scmp.ne.s32.totalorder %s54, %s56
      %p63 = scmp.eq.s32.totalorder %s25, 1
      %p64 = por %p62, %p63
      %p65 = scmp.ne.s32.totalorder %s56, %s57
      %p66 = scmp.eq.s32.totalorder %s25, 0
      %p67 = por %p65, %p66
      %p68 = scmp.ne.s32.totalorder %s56, %s57
      %p69 = scmp.eq.s32.totalorder %s26, 1
      %p70 = por %p68, %p69
      %p72 = scmp.ne.s32.totalorder %s57, %s71
      %p73 = scmp.eq.s32.totalorder %s26, 0
      %p74 = por %p72, %p73
      %s76 = sadd.s32 %s75, 1
      %p79 = scmp.eq.s32.totalorder %s20, 1
      %p80 = scmp.ne.s32.totalorder %s75, %s77
      %p81 = scmp.eq.s32.totalorder %s20, 0
      %p82 = por %p80, %p81
      %p83 = scmp.ne.s32.totalorder %s75, %s77
      %p84 = scmp.eq.s32.totalorder %s25, 1
      %p85 = por %p83, %p84
      %p86 = scmp.ne.s32.totalorder %s77, %s78
      %p87 = scmp.eq.s32.totalorder %s25, 0
      %p88 = por %p86, %p87
      %p89 = scmp.ne.s32.totalorder %s77, %s78
      %p90 = scmp.eq.s32.totalorder %s26, 1
      %p91 = por %p89, %p90
      %p93 = scmp.ne.s32.totalorder %s78, %s92
      %p94 = scmp.eq.s32.totalorder %s26, 0
      %p95 = por %p93, %p94
      %s97 = sadd.s32 %s96, 1
      %p100 = scmp.eq.s32.totalorder %s20, 1
      %p101 = scmp.ne.s32.totalorder %s96, %s98
      %p102 = scmp.eq.s32.totalorder %s20, 0
      %p103 = por %p101, %p102
      %p104 = scmp.ne.s32.totalorder %s96, %s98
      %p105 = scmp.eq.s32.totalorder %s25, 1
      %p106 = por %p104, %p105
      %p107 = scmp.ne.s32.totalorder %s98, %s99
      %p108 = scmp.eq.s32.totalorder %s25, 0
      %p109 = por %p107, %p108
      %p110 = scmp.ne.s32.totalorder %s98, %s99
      %p111 = scmp.eq.s32.totalorder %s26, 1
      %p112 = por %p110, %p111
      %p114 = scmp.ne.s32.totalorder %s99, %s113
      %p115 = scmp.eq.s32.totalorder %s26, 0
      %p116 = por %p114, %p115
      %s118 = sadd.s32 %s117, 1
      %p121 = scmp.eq.s32.totalorder %s20, 1
      %p122 = scmp.ne.s32.totalorder %s117, %s119
      %p123 = scmp.eq.s32.totalorder %s20, 0
      %p124 = por %p122, %p123
      %p125 = scmp.ne.s32.totalorder %s117, %s119
      %p126 = scmp.eq.s32.totalorder %s25, 1
      %p127 = por %p125, %p126
      %p128 = scmp.ne.s32.totalorder %s119, %s120
      %p129 = scmp.eq.s32.totalorder %s25, 0
      %p130 = por %p128, %p129
      %p131 = scmp.ne.s32.totalorder %s119, %s120
      %p132 = scmp.eq.s32.totalorder %s26, 1
      %p133 = por %p131, %p132
      %p135 = scmp.ne.s32.totalorder %s120, %s134
      %p136 = scmp.eq.s32.totalorder %s26, 0
      %p137 = por %p135, %p136
      %s139 = sadd.s32 %s138, 1
      %p142 = scmp.eq.s32.totalorder %s20, 1
      %p143 = scmp.ne.s32.totalorder %s138, %s140
      %p144 = scmp.eq.s32.totalorder %s20, 0
      %p145 = por %p143, %p144
      %p146 = scmp.ne.s32.totalorder %s138, %s140
      %p147 = scmp.eq.s32.totalorder %s25, 1
      %p148 = por %p146, %p147
      %p149 = scmp.ne.s32.totalorder %s140, %s141
      %p150 = scmp.eq.s32.totalorder %s25, 0
      %p151 = por %p149, %p150
      %p152 = scmp.ne.s32.totalorder %s140, %s141
      %p153 = scmp.eq.s32.totalorder %s26, 1
      %p154 = por %p152, %p153
      %p156 = scmp.ne.s32.totalorder %s141, %s155
      %p157 = scmp.eq.s32.totalorder %s26, 0
      %p158 = por %p156, %p157
      %s160 = sadd.s32 %s159, 1
      %p163 = scmp.eq.s32.totalorder %s20, 1
      %p164 = scmp.ne.s32.totalorder %s159, %s161
      %p165 = scmp.eq.s32.totalorder %s20, 0
      %p166 = por %p164, %p165
      %p167 = scmp.ne.s32.totalorder %s159, %s161
      %p168 = scmp.eq.s32.totalorder %s25, 1
      %p169 = por %p167, %p168
      %p170 = scmp.ne.s32.totalorder %s161, %s162
      %p171 = scmp.eq.s32.totalorder %s25, 0
      %p172 = por %p170, %p171
      %p173 = scmp.ne.s32.totalorder %s161, %s162
      %p174 = scmp.eq.s32.totalorder %s26, 1
      %p175 = por %p173, %p174
      %p177 = scmp.ne.s32.totalorder %s162, %s176
      %p178 = scmp.eq.s32.totalorder %s26, 0
      %p179 = por %p177, %p178
      %s180 = ssub.s32 %s20, %s27
      %p181 = scmp.eq.s32.totalorder %s180, 0
      %s183 = sadd.s32 %s182, 1
      %s184 = scalar_select %p181, %s182, %s183
      %p187 = pneg %p181
      %p188 = scmp.eq.s32.totalorder %s20, 1
      %p189 = por %p187, %p188
      %p190 = scmp.ne.s32.totalorder %s182, %s185
      %p191 = scmp.eq.s32.totalorder %s20, 0
      %p192 = por %p190, %p191
      %p193 = scmp.ne.s32.totalorder %s182, %s185
      %p194 = scmp.eq.s32.totalorder %s25, 1
      %p195 = por %p193, %p194
      %p196 = scmp.ne.s32.totalorder %s185, %s186
      %p197 = scmp.eq.s32.totalorder %s25, 0
      %p198 = por %p196, %p197
      %p199 = scmp.ne.s32.totalorder %s185, %s186
      %p200 = scmp.eq.s32.totalorder %s26, 1
      %p201 = por %p199, %p200
      %p203 = scmp.ne.s32.totalorder %s186, %s202
      %p204 = scmp.eq.s32.totalorder %s26, 0
      %p205 = por %p203, %p204
      %p206 = scmp.le.s32.totalorder 1, %s20
      %p207 = scmp.lt.s32.totalorder %s20, 3
      %p208 = pnand %p206, %p207
      %p209 = pneg %p208
      // Predicated region
      $region9: #{tpu_custom_call.1} parent=5 // pred_check
        _
      $region10: #{tpu_custom_call.1} parent=5 // pred_check_branch
        %211 = sbr.rel (%p208) target = $region12
      $region11: #{tpu_custom_call.1} parent=5 // pred_region
        %s212 = ssub.s32 %s20, 1
        // Predicated region
        $region13: #{tpu_custom_call.1} parent=11 // pred_check
          %p213 = pneg %p67
        $region14: #{tpu_custom_call.1} parent=11 // pred_check_branch
          %215 = sbr.rel (%p213) target = $region16
        $region15: #{tpu_custom_call.1} parent=11 // pred_region
          %217 = vsyncadd [#allocation6], 0
          %s218 = sshll.u32 %s1, 4
          %s219 = int_to_ptr.hbm [resolvable:$true] %s218
          %s220 = sshll.u32 [#allocation5], 4
          %s221 = int_to_ptr.vmem [resolvable:$true] %s220
          %226 = dma.hbm_to_vmem [thread:$0]  %s219, 1024, %s221, [#allocation6], 64, 64, 4
        $region16: #{tpu_custom_call.1} parent=11 // pred_fallthru
          _
        // Predicated region
        $region17: #{tpu_custom_call.1} parent=11 // pred_check
          %p227 = pneg %p88
        $region18: #{tpu_custom_call.1} parent=11 // pred_check_branch
          %229 = sbr.rel (%p227) target = $region20
        $region19: #{tpu_custom_call.1} parent=11 // pred_region
          _
        $region20: #{tpu_custom_call.1} parent=11 // pred_fallthru
          _
        // Predicated region
        $region21: #{tpu_custom_call.1} parent=11 // pred_check
          %p230 = pneg %p109
        $region22: #{tpu_custom_call.1} parent=11 // pred_check_branch
          %232 = sbr.rel (%p230) target = $region24
        $region23: #{tpu_custom_call.1} parent=11 // pred_region
          _
        $region24: #{tpu_custom_call.1} parent=11 // pred_fallthru
          _
        // Predicated region
        $region25: #{tpu_custom_call.1} parent=11 // pred_check
          %p233 = pneg %p130
        $region26: #{tpu_custom_call.1} parent=11 // pred_check_branch
          %235 = sbr.rel (%p233) target = $region28
        $region27: #{tpu_custom_call.1} parent=11 // pred_region
          %237 = vsyncadd [#allocation6], 0
          %s238 = sshll.u32 %s4, 4
          %s239 = int_to_ptr.hbm [resolvable:$true] %s238
          %s240 = sshll.u32 [#allocation7], 4
          %s241 = int_to_ptr.vmem [resolvable:$true] %s240
          %246 = dma.hbm_to_vmem [thread:$0]  %s239, 1024, %s241, [#allocation6], 64, 64, 4
        $region28: #{tpu_custom_call.1} parent=11 // pred_fallthru
          _
        // Predicated region
        $region29: #{tpu_custom_call.1} parent=11 // pred_check
          %p247 = pneg %p151
        $region30: #{tpu_custom_call.1} parent=11 // pred_check_branch
          %249 = sbr.rel (%p247) target = $region32
        $region31: #{tpu_custom_call.1} parent=11 // pred_region
          _
        $region32: #{tpu_custom_call.1} parent=11 // pred_fallthru
          _
        // Predicated region
        $region33: #{tpu_custom_call.1} parent=11 // pred_check
          %p250 = pneg %p172
        $region34: #{tpu_custom_call.1} parent=11 // pred_check_branch
          %252 = sbr.rel (%p250) target = $region36
        $region35: #{tpu_custom_call.1} parent=11 // pred_region
          _
        $region36: #{tpu_custom_call.1} parent=11 // pred_fallthru
          _
      $region12: #{tpu_custom_call.1} parent=5 // pred_fallthru
        _
      %p253 = scmp.lt.s32.totalorder %s20, 2
      // Predicated region
      $region37: #{tpu_custom_call.1} parent=5 // pred_check
        %p254 = pneg %p253
      $region38: #{tpu_custom_call.1} parent=5 // pred_check_branch
        %256 = sbr.rel (%p254) target = $region40
      $region39: #{tpu_custom_call.1} parent=5 // pred_region
        // Predicated region
        $region41: #{tpu_custom_call.1} parent=39 // pred_check
          %p257 = pneg %p40
        $region42: #{tpu_custom_call.1} parent=39 // pred_check_branch
          %259 = sbr.rel (%p257) target = $region44
        $region43: #{tpu_custom_call.1} parent=39 // pred_region
          %s260 = sand.u32 %s30, 1
          %s261 = scalar_lea.sflag [#allocation3], %s260
          %s262 = sand.u32 %s30, 1
          %s263 = smul.addr %s262, 32
          %s264 = scalar_lea.vmem [#allocation2], %s263
          %s265 = smul.u32 2, %s20
          %267 = vsyncadd %s261, 0
          %s268 = smul.addr %s265, 2
          %s269 = smul.addr %s268, 8
          %s270 = scalar_lea.hbm %s0, %s269
          %s271 = sshll.u32 %s270, 4
          %s272 = int_to_ptr.hbm [resolvable:$true] %s271
          %s273 = sshll.u32 %s264, 4
          %s274 = int_to_ptr.vmem [resolvable:$true] %s273
          %279 = dma.hbm_to_vmem [thread:$0]  %s272, 512, %s274, %s261, 128, 128, 8
        $region44: #{tpu_custom_call.1} parent=39 // pred_fallthru
          _
      $region40: #{tpu_custom_call.1} parent=5 // pred_fallthru
        _
      %p280 = scmp.le.s32.totalorder 1, %s20
      %p281 = scmp.lt.s32.totalorder %s20, 3
      %p282 = pnand %p280, %p281
      %p283 = pneg %p282
      // Predicated region
      $region45: #{tpu_custom_call.1} parent=5 // pred_check
        _
      $region46: #{tpu_custom_call.1} parent=5 // pred_check_branch
        %285 = sbr.rel (%p282) target = $region48
      $region47: #{tpu_custom_call.1} parent=5 // pred_region
        %s286 = ssub.s32 %s20, 1
        %s287 = sand.u32 %s33, 1
        %s288 = scalar_lea.sflag [#allocation3], %s287
        %s289 = sand.u32 %s33, 1
        %s290 = smul.addr %s289, 32
        %s291 = scalar_lea.vmem [#allocation2], %s290
        // Predicated region
        $region49: #{tpu_custom_call.1} parent=47 // pred_check
          %p292 = pneg %p46
        $region50: #{tpu_custom_call.1} parent=47 // pred_check_branch
          %294 = sbr.rel (%p292) target = $region52
        $region51: #{tpu_custom_call.1} parent=47 // pred_region
          %296 = dma.done %s288, 512
        $region52: #{tpu_custom_call.1} parent=47 // pred_fallthru
          _
        // Predicated region
        $region53: #{tpu_custom_call.1} parent=47 // pred_check
          %p297 = pneg %p67
        $region54: #{tpu_custom_call.1} parent=47 // pred_check_branch
          %299 = sbr.rel (%p297) target = $region56
        $region55: #{tpu_custom_call.1} parent=47 // pred_region
          %301 = dma.done [#allocation6], 1024
        $region56: #{tpu_custom_call.1} parent=47 // pred_fallthru
          _
        // Predicated region
        $region57: #{tpu_custom_call.1} parent=47 // pred_check
          %p302 = pneg %p130
        $region58: #{tpu_custom_call.1} parent=47 // pred_check_branch
          %304 = sbr.rel (%p302) target = $region60
        $region59: #{tpu_custom_call.1} parent=47 // pred_region
          %306 = dma.done [#allocation6], 1024
        $region60: #{tpu_custom_call.1} parent=47 // pred_fallthru
          _
        %s307 = sand.u32 %s33, 1
        %s308 = scalar_lea.sflag [#allocation3], %s307
        %s309 = sand.u32 %s33, 1
        %s310 = smul.addr %s309, 32
        %s311 = scalar_lea.vmem [#allocation2], %s310
        %p312 = pneg %p46
        %p313 = pneg %p43
        %p314 = pneg %p67
        %p315 = pneg %p64
        %p316 = pneg %p88
        %p317 = pneg %p85
        %p318 = pneg %p109
        %p319 = pneg %p106
        %p320 = pneg %p130
        %p321 = pneg %p127
        %p322 = pneg %p151
        %p323 = pneg %p148
        %p324 = pneg %p172
        %p325 = pneg %p169
        %p326 = pneg %p198
        %p327 = pneg %p195
        %s328 = sand.u32 %s185, 1
        %s329 = scalar_lea.sflag [#allocation4], %s328
        %s330 = sand.u32 %s185, 1
        %s331 = smul.addr %s330, 32
        %s332 = scalar_lea.vmem [#allocation8], %s331
        %s333 = smul.u32 2, %s25
        %s334 = smul.u32 2, %s25
        %v335 = vld [vmem:[%s291] sm:$0xff]
        %v336 = vld [vmem:[%s291 + $0x8] sm:$0xff]
        %v337 = vld [vmem:[%s291 + $0x10] sm:$0xff]
        %v338 = vld [vmem:[%s291 + $0x18] sm:$0xff]
        %v339 = vpack.c.bf16 %v336, %v335
        %v340 = vpack.c.bf16 %v338, %v337
        %v341 = vld [vmem:[#allocation5] sm:$0xf]
        %v342 = vld [vmem:[#allocation5 + $0x4] sm:$0xf]
        %v343 = vld [vmem:[#allocation5 + $0x8] sm:$0xf]
        %v344 = vld [vmem:[#allocation5 + $0xc] sm:$0xf]
        %v345 = vld [vmem:[#allocation5 + $0x10] sm:$0xf]
        %v346 = vld [vmem:[#allocation5 + $0x14] sm:$0xf]
        %v347 = vld [vmem:[#allocation5 + $0x18] sm:$0xf]
        %v348 = vld [vmem:[#allocation5 + $0x1c] sm:$0xf]
        %v349 = vld [vmem:[#allocation5 + $0x20] sm:$0xf]
        %v350 = vld [vmem:[#allocation5 + $0x24] sm:$0xf]
        %v351 = vld [vmem:[#allocation5 + $0x28] sm:$0xf]
        %v352 = vld [vmem:[#allocation5 + $0x2c] sm:$0xf]
        %v353 = vld [vmem:[#allocation5 + $0x30] sm:$0xf]
        %v354 = vld [vmem:[#allocation5 + $0x34] sm:$0xf]
        %v355 = vld [vmem:[#allocation5 + $0x38] sm:$0xf]
        %v356 = vld [vmem:[#allocation5 + $0x3c] sm:$0xf]
        %v373 = vunpack.c.l.b16 %v341
        %v374 = vunpack.c.l.b16 %v342
        %v375 = vunpack.c.l.b16 %v343
        %v376 = vunpack.c.l.b16 %v344
        %v377 = vunpack.c.l.b16 %v345
        %v378 = vunpack.c.l.b16 %v346
        %v379 = vunpack.c.l.b16 %v347
        %v380 = vunpack.c.l.b16 %v348
        %v381 = vunpack.c.l.b16 %v349
        %v382 = vunpack.c.l.b16 %v350
        %v383 = vunpack.c.l.b16 %v351
        %v384 = vunpack.c.l.b16 %v352
        %v385 = vunpack.c.l.b16 %v353
        %v386 = vunpack.c.l.b16 %v354
        %v387 = vunpack.c.l.b16 %v355
        %v388 = vunpack.c.l.b16 %v356
        %v389 = vpack.c.b16 %v374, %v373
        %v390 = vpack.c.b16 %v376, %v375
        %v391 = vpack.c.b16 %v378, %v377
        %v392 = vpack.c.b16 %v380, %v379
        %v393 = vpack.c.b16 %v382, %v381
        %v394 = vpack.c.b16 %v384, %v383
        %v395 = vpack.c.b16 %v386, %v385
        %v396 = vpack.c.b16 %v388, %v387
        %405 = vmatpush.bf16.msra.mxu0 %v396
        %406 = vmatpush.bf16.msra.mxu0 %v395
        %407 = vmatpush.bf16.msra.mxu0 %v394
        %408 = vmatpush.bf16.msra.mxu0 %v393
        %409 = vmatpush.bf16.msra.mxu0 %v392
        %410 = vmatpush.bf16.msra.mxu0 %v391
        %411 = vmatpush.bf16.msra.mxu0 %v390
        %412 = vmatpush.bf16.msra.mxu0 %v389
        %413 = vmatmul.bf16.gmra.mxu0 %v339
        %v414 = vpop.f32.mrf.mxu0
        %v415 = vadd.f32 0.0, %v414
        %v416 = vpop.f32.mrf.mxu0
        %v417 = vadd.f32 0.0, %v416
        %418 = vmatmul.bf16.gmra.mxu0 %v340
        %v419 = vpop.f32.mrf.mxu0
        %v420 = vadd.f32 0.0, %v419
        %v421 = vpop.f32.mrf.mxu0
        %v422 = vadd.f32 0.0, %v421
        %423 = vdwg.mxu0
        %v424 = vadd.f32 %v415, %v417
        %v425 = vrot.slane %v424, 4
        %v426 = vadd.f32 %v424, %v425
        %v427 = vrot.slane %v426, 2
        %v428 = vadd.f32 %v426, %v427
        %v429 = vrot.slane %v428, 1
        %v430 = vadd.f32 %v428, %v429
        %v431 = vadd.f32 %v420, %v422
        %v432 = vrot.slane %v431, 4
        %v433 = vadd.f32 %v431, %v432
        %v434 = vrot.slane %v433, 2
        %v435 = vadd.f32 %v433, %v434
        %v436 = vrot.slane %v435, 1
        %v437 = vadd.f32 %v435, %v436
        %v438 = vrcp.pop 16.0
        %v439 = vmul.f32 16.0, %v438
        %v440 = vsub.f32 1.0, %v439
        %v441 = vmul.f32 %v438, %v440
        %v442 = vadd.f32 %v438, %v441
        %vm443 = vweird.f32 %v438
        %v444 = vsel %vm443, %v438, %v442
        %v445 = vmul.f32 %v430, %v444
        %v446 = vmul.f32 %v437, %v444
        %v447 = vmul.f32 %v415, %v415
        %v448 = vmul.f32 %v417, %v417
        %v449 = vmul.f32 %v420, %v420
        %v450 = vmul.f32 %v422, %v422
        %v451 = vadd.f32 %v447, %v448
        %v452 = vrot.slane %v451, 4
        %v453 = vadd.f32 %v451, %v452
        %v454 = vrot.slane %v453, 2
        %v455 = vadd.f32 %v453, %v454
        %v456 = vrot.slane %v455, 1
        %v457 = vadd.f32 %v455, %v456
        %v458 = vadd.f32 %v449, %v450
        %v459 = vrot.slane %v458, 4
        %v460 = vadd.f32 %v458, %v459
        %v461 = vrot.slane %v460, 2
        %v462 = vadd.f32 %v460, %v461
        %v463 = vrot.slane %v462, 1
        %v464 = vadd.f32 %v462, %v463
        %v465 = vmul.f32 %v457, %v444
        %v466 = vmul.f32 %v464, %v444
        %v467 = vmul.f32 %v445, %v445
        %v468 = vmul.f32 %v446, %v446
        %v469 = vsub.f32 %v465, %v467
        %v470 = vsub.f32 %v466, %v468
        %v471 = vmax.f32 %v469, 0.0
        %v472 = vmax.f32 %v470, 0.0
        %v473 = vld [vmem:[%s2] sm:$0x1]
        %v474 = vadd.f32 %v471, 1e-05
        %v475 = vadd.f32 %v472, 1e-05
        %v476 = vrsqrt.pop %v474
        %v477 = vmul.f32 %v476, %v474
        %v478 = vmul.f32 %v477, %v476
        %v479 = vmul.f32 0.5, %v478
        %v480 = vsub.f32 1.5, %v479
        %v481 = vmul.f32 %v476, %v480
        %vm482 = vweird.f32 %v474
        %vm483 = vweird.f32 %v476
        %vm484 = vmor %vm482, %vm483
        %v485 = vsel %vm484, %v476, %v481
        %v486 = vrsqrt.pop %v475
        %v487 = vmul.f32 %v486, %v475
        %v488 = vmul.f32 %v487, %v486
        %v489 = vmul.f32 0.5, %v488
        %v490 = vsub.f32 1.5, %v489
        %v491 = vmul.f32 %v486, %v490
        %vm492 = vweird.f32 %v475
        %vm493 = vweird.f32 %v486
        %vm494 = vmor %vm492, %vm493
        %v495 = vsel %vm494, %v486, %v491
        %v496 = vmul.f32 %v473, %v485
        %v497 = vmul.f32 %v473, %v495
        %v498 = vld [vmem:[%s3] sm:$0x1]
        %v499 = vmul.f32 %v445, %v496
        %v500 = vmul.f32 %v446, %v497
        %v501 = vsub.f32 %v498, %v499
        %v502 = vsub.f32 %v498, %v500
        %v505 = vperm.slane %v496, 0
        %v506 = vperm.slane %v497, 0
        %v509 = vmul.f32 %v415, %v505
        %v510 = vmul.f32 %v417, %v505
        %v511 = vmul.f32 %v420, %v506
        %v512 = vmul.f32 %v422, %v506
        %v515 = vperm.slane %v501, 0
        %v516 = vperm.slane %v502, 0
        %v519 = vadd.f32 %v509, %v515
        %v520 = vadd.f32 %v510, %v515
        %v521 = vadd.f32 %v511, %v516
        %v522 = vadd.f32 %v512, %v516
        %v523 = vmax.f32 %v519, 0.0
        %v524 = vmax.f32 %v520, 0.0
        %v525 = vmax.f32 %v521, 0.0
        %v526 = vmax.f32 %v522, 0.0
        %v527 = vpack.c.bf16 %v523, %v523
        %v528 = vpack.c.bf16 %v524, %v524
        %v529 = vpack.c.bf16 %v525, %v525
        %v530 = vpack.c.bf16 %v526, %v526
        %v531 = vld [vmem:[#allocation7] sm:$0xf]
        %v532 = vld [vmem:[#allocation7 + $0x4] sm:$0xf]
        %v533 = vld [vmem:[#allocation7 + $0x8] sm:$0xf]
        %v534 = vld [vmem:[#allocation7 + $0xc] sm:$0xf]
        %v535 = vld [vmem:[#allocation7 + $0x10] sm:$0xf]
        %v536 = vld [vmem:[#allocation7 + $0x14] sm:$0xf]
        %v537 = vld [vmem:[#allocation7 + $0x18] sm:$0xf]
        %v538 = vld [vmem:[#allocation7 + $0x1c] sm:$0xf]
        %v539 = vld [vmem:[#allocation7 + $0x20] sm:$0xf]
        %v540 = vld [vmem:[#allocation7 + $0x24] sm:$0xf]
        %v541 = vld [vmem:[#allocation7 + $0x28] sm:$0xf]
        %v542 = vld [vmem:[#allocation7 + $0x2c] sm:$0xf]
        %v543 = vld [vmem:[#allocation7 + $0x30] sm:$0xf]
        %v544 = vld [vmem:[#allocation7 + $0x34] sm:$0xf]
        %v545 = vld [vmem:[#allocation7 + $0x38] sm:$0xf]
        %v546 = vld [vmem:[#allocation7 + $0x3c] sm:$0xf]
        %v551 = vunpack.c.l.b16 %v527
        %v552 = vunpack.c.l.b16 %v528
        %v553 = vunpack.c.l.b16 %v529
        %v554 = vunpack.c.l.b16 %v530
        %v555 = vpack.c.b16 %v552, %v551
        %v556 = vpack.c.b16 %v554, %v553
        %v575 = vunpack.c.l.b16 %v531
        %v576 = vunpack.c.l.b16 %v532
        %v577 = vunpack.c.l.b16 %v533
        %v578 = vunpack.c.l.b16 %v534
        %v579 = vunpack.c.l.b16 %v535
        %v580 = vunpack.c.l.b16 %v536
        %v581 = vunpack.c.l.b16 %v537
        %v582 = vunpack.c.l.b16 %v538
        %v583 = vunpack.c.l.b16 %v539
        %v584 = vunpack.c.l.b16 %v540
        %v585 = vunpack.c.l.b16 %v541
        %v586 = vunpack.c.l.b16 %v542
        %v587 = vunpack.c.l.b16 %v543
        %v588 = vunpack.c.l.b16 %v544
        %v589 = vunpack.c.l.b16 %v545
        %v590 = vunpack.c.l.b16 %v546
        %v591 = vpack.c.b16 %v576, %v575
        %v592 = vpack.c.b16 %v578, %v577
        %v593 = vpack.c.b16 %v580, %v579
        %v594 = vpack.c.b16 %v582, %v581
        %v595 = vpack.c.b16 %v584, %v583
        %v596 = vpack.c.b16 %v586, %v585
        %v597 = vpack.c.b16 %v588, %v587
        %v598 = vpack.c.b16 %v590, %v589
        %607 = vmatpush.bf16.msra.mxu0 %v598
        %608 = vmatpush.bf16.msra.mxu0 %v597
        %609 = vmatpush.bf16.msra.mxu0 %v596
        %610 = vmatpush.bf16.msra.mxu0 %v595
        %611 = vmatpush.bf16.msra.mxu0 %v594
        %612 = vmatpush.bf16.msra.mxu0 %v593
        %613 = vmatpush.bf16.msra.mxu0 %v592
        %614 = vmatpush.bf16.msra.mxu0 %v591
        %615 = vmatmul.bf16.gmra.mxu0 %v555
        %v616 = vpop.f32.mrf.mxu0
        %v617 = vadd.f32 0.0, %v616
        %v618 = vpop.f32.mrf.mxu0
        %v619 = vadd.f32 0.0, %v618
        %620 = vmatmul.bf16.gmra.mxu0 %v556
        %v621 = vpop.f32.mrf.mxu0
        %v622 = vadd.f32 0.0, %v621
        %v623 = vpop.f32.mrf.mxu0
        %v624 = vadd.f32 0.0, %v623
        %625 = vdwg.mxu0
        %v626 = vadd.f32 %v617, %v619
        %v627 = vrot.slane %v626, 4
        %v628 = vadd.f32 %v626, %v627
        %v629 = vrot.slane %v628, 2
        %v630 = vadd.f32 %v628, %v629
        %v631 = vrot.slane %v630, 1
        %v632 = vadd.f32 %v630, %v631
        %v633 = vadd.f32 %v622, %v624
        %v634 = vrot.slane %v633, 4
        %v635 = vadd.f32 %v633, %v634
        %v636 = vrot.slane %v635, 2
        %v637 = vadd.f32 %v635, %v636
        %v638 = vrot.slane %v637, 1
        %v639 = vadd.f32 %v637, %v638
        %v640 = vmul.f32 %v632, %v444
        %v641 = vmul.f32 %v639, %v444
        %v642 = vmul.f32 %v617, %v617
        %v643 = vmul.f32 %v619, %v619
        %v644 = vmul.f32 %v622, %v622
        %v645 = vmul.f32 %v624, %v624
        %v646 = vadd.f32 %v642, %v643
        %v647 = vrot.slane %v646, 4
        %v648 = vadd.f32 %v646, %v647
        %v649 = vrot.slane %v648, 2
        %v650 = vadd.f32 %v648, %v649
        %v651 = vrot.slane %v650, 1
        %v652 = vadd.f32 %v650, %v651
        %v653 = vadd.f32 %v644, %v645
        %v654 = vrot.slane %v653, 4
        %v655 = vadd.f32 %v653, %v654
        %v656 = vrot.slane %v655, 2
        %v657 = vadd.f32 %v655, %v656
        %v658 = vrot.slane %v657, 1
        %v659 = vadd.f32 %v657, %v658
        %v660 = vmul.f32 %v652, %v444
        %v661 = vmul.f32 %v659, %v444
        %v662 = vmul.f32 %v640, %v640
        %v663 = vmul.f32 %v641, %v641
        %v664 = vsub.f32 %v660, %v662
        %v665 = vsub.f32 %v661, %v663
        %v666 = vmax.f32 %v664, 0.0
        %v667 = vmax.f32 %v665, 0.0
        %v668 = vld [vmem:[%s5] sm:$0x1]
        %v669 = vadd.f32 %v666, 1e-05
        %v670 = vadd.f32 %v667, 1e-05
        %v671 = vrsqrt.pop %v669
        %v672 = vmul.f32 %v671, %v669
        %v673 = vmul.f32 %v672, %v671
        %v674 = vmul.f32 0.5, %v673
        %v675 = vsub.f32 1.5, %v674
        %v676 = vmul.f32 %v671, %v675
        %vm677 = vweird.f32 %v669
        %vm678 = vweird.f32 %v671
        %vm679 = vmor %vm677, %vm678
        %v680 = vsel %vm679, %v671, %v676
        %v681 = vrsqrt.pop %v670
        %v682 = vmul.f32 %v681, %v670
        %v683 = vmul.f32 %v682, %v681
        %v684 = vmul.f32 0.5, %v683
        %v685 = vsub.f32 1.5, %v684
        %v686 = vmul.f32 %v681, %v685
        %vm687 = vweird.f32 %v670
        %vm688 = vweird.f32 %v681
        %vm689 = vmor %vm687, %vm688
        %v690 = vsel %vm689, %v681, %v686
        %v691 = vmul.f32 %v668, %v680
        %v692 = vmul.f32 %v668, %v690
        %v693 = vld [vmem:[%s6] sm:$0x1]
        %v694 = vmul.f32 %v640, %v691
        %v695 = vmul.f32 %v641, %v692
        %v696 = vsub.f32 %v693, %v694
        %v697 = vsub.f32 %v693, %v695
        %v700 = vperm.slane %v691, 0
        %v701 = vperm.slane %v692, 0
        %v704 = vmul.f32 %v617, %v700
        %v705 = vmul.f32 %v619, %v700
        %v706 = vmul.f32 %v622, %v701
        %v707 = vmul.f32 %v624, %v701
        %v710 = vperm.slane %v696, 0
        %v711 = vperm.slane %v697, 0
        %v714 = vadd.f32 %v704, %v710
        %v715 = vadd.f32 %v705, %v710
        %v716 = vadd.f32 %v706, %v711
        %v717 = vadd.f32 %v707, %v711
        %v718 = vadd.f32 %v714, %v335
        %v719 = vadd.f32 %v715, %v336
        %v720 = vadd.f32 %v716, %v337
        %v721 = vadd.f32 %v717, %v338
        %v722 = vmax.f32 %v718, 0.0
        %v723 = vmax.f32 %v719, 0.0
        %v724 = vmax.f32 %v720, 0.0
        %v725 = vmax.f32 %v721, 0.0
        %726 = vst [vmem:[%s332] sm:$0xff] %v722
        %727 = vst [vmem:[%s332 + $0x8] sm:$0xff] %v723
        %728 = vst [vmem:[%s332 + $0x10] sm:$0xff] %v724
        %729 = vst [vmem:[%s332 + $0x18] sm:$0xff] %v725
        %s730 = sand.u32 %s185, 1
        %s731 = scalar_lea.sflag [#allocation4], %s730
        %s732 = sand.u32 %s185, 1
        %s733 = smul.addr %s732, 32
        %s734 = scalar_lea.vmem [#allocation8], %s733
        // Predicated region
        $region61: #{tpu_custom_call.1} parent=47 // pred_check
          %p735 = pneg %p195
        $region62: #{tpu_custom_call.1} parent=47 // pred_check_branch
          %737 = sbr.rel (%p735) target = $region64
        $region63: #{tpu_custom_call.1} parent=47 // pred_region
          %s738 = smul.u32 2, %s25
          %740 = vsyncadd %s731, 0
          %s741 = smul.addr %s738, 2
          %s742 = smul.addr %s741, 8
          %s743 = scalar_lea.hbm %s7, %s742
          %s744 = sshll.u32 %s734, 4
          %s745 = int_to_ptr.vmem [resolvable:$true] %s744
          %s746 = sshll.u32 %s743, 4
          %s747 = int_to_ptr.hbm [resolvable:$true] %s746
          %752 = dma.vmem_to_hbm [thread:$0]  %s745, 512, %s747, %s731, 128, 128, 8
        $region64: #{tpu_custom_call.1} parent=47 // pred_fallthru
          _
      $region48: #{tpu_custom_call.1} parent=5 // pred_fallthru
        _
      %p753 = scmp.le.s32.totalorder 2, %s20
      // Predicated region
      $region65: #{tpu_custom_call.1} parent=5 // pred_check
        %p754 = pneg %p753
      $region66: #{tpu_custom_call.1} parent=5 // pred_check_branch
        %756 = sbr.rel (%p754) target = $region68
      $region67: #{tpu_custom_call.1} parent=5 // pred_region
        %s757 = ssub.s32 %s20, 2
        // Predicated region
        $region69: #{tpu_custom_call.1} parent=67 // pred_check
          %p758 = pneg %p201
        $region70: #{tpu_custom_call.1} parent=67 // pred_check_branch
          %760 = sbr.rel (%p758) target = $region72
        $region71: #{tpu_custom_call.1} parent=67 // pred_region
          %s761 = sand.u32 %s186, 1
          %s762 = scalar_lea.sflag [#allocation4], %s761
          %s763 = sand.u32 %s186, 1
          %s764 = smul.addr %s763, 32
          %s765 = scalar_lea.vmem [#allocation8], %s764
          %767 = dma.done %s762, 512
        $region72: #{tpu_custom_call.1} parent=67 // pred_fallthru
          _
      $region68: #{tpu_custom_call.1} parent=5 // pred_fallthru
        _
    $region6: #{tpu_custom_call.1} parent=1 // loop_footer
      %s24 = sadd.s32 1, %s20
    $region7: #{tpu_custom_call.1} parent=1 // loop_footer_branch
      %19 = sbr.rel target = $region3
    $region8: #{tpu_custom_call.1} parent=1 // loop_exit
      _
    %768 = vsyncpa [#allocation3], 1
    %s769 = scalar_lea.sflag [#allocation3], 1
    %770 = vsyncpa %s769, 1
    %771 = vsyncpa [#allocation6], 1
    %772 = vsyncpa [#allocation4], 1
    %s773 = scalar_lea.sflag [#allocation4], 1
    %774 = vsyncpa %s773, 1

// kernel: tpu_custom_call.1
$region0: #{tpu_custom_call.1}
  #allocation0 [shape = 'u32[]', space=smem, size = 0x4, offset = 0x4, fixed_abs, tag = 'smem constant byte address 0x4 - core index']
  #allocation1 [shape = 'u32[72,128]{1,0:T(1,128)}', space=vmem, size = 0x9000, scoped, tag = 'internal scratch']
  %s0 = inlined_call_operand.hbm [shape: f32[4,16,128], index: 0, kind: input, shape index: {}]
  %s1 = inlined_call_operand.hbm [shape: bf16[128,128], index: 1, kind: input, shape index: {}]
  %s2 = inlined_call_operand.vmem [shape: f32[1,128], index: 2, kind: input, shape index: {}]
  %s3 = inlined_call_operand.vmem [shape: f32[1,128], index: 3, kind: input, shape index: {}]
  %s4 = inlined_call_operand.hbm [shape: bf16[128,128], index: 4, kind: input, shape index: {}]
  %s5 = inlined_call_operand.vmem [shape: f32[1,128], index: 5, kind: input, shape index: {}]
  %s6 = inlined_call_operand.vmem [shape: f32[1,128], index: 6, kind: input, shape index: {}]
  %s7 = inlined_call_operand.hbm [shape: f32[4,16,128], index: 7, kind: output, shape index: {}]
  %s8 = sld [smem:[#allocation0]]
  $region73: #{tpu_custom_call.1} parent=0
    _
  %s10 = ssub.s32 1, %s8
  %s11 = scalar_select 0, %s10, %s8
  $region1: #{tpu_custom_call.1} parent=0
    #allocation2 [shape = 'u8[32768]{0}', space=vmem, size = 0x8000, scoped, tag = 'input window, operand 0']
    #allocation3 [shape = 's32[2]{0}', space=sflag, size = 0x8, scoped, tag = 'scoped memory for tpu_custom_call.1']
    #allocation4 [shape = 's32[2]{0}', space=sflag, size = 0x8, scoped, tag = 'scoped memory for tpu_custom_call.1']
    #allocation5 [shape = 'u8[32768]{0}', space=vmem, size = 0x8000, scoped, tag = 'input window, operand 1, single buffered']
    #allocation6 [shape = 's32[1]{0}', space=sflag, size = 0x4, scoped, tag = 'scoped memory for tpu_custom_call.1']
    #allocation7 [shape = 'u8[32768]{0}', space=vmem, size = 0x8000, scoped, tag = 'input window, operand 4, single buffered']
    #allocation8 [shape = 'u8[32768]{0}', space=vmem, size = 0x8000, scoped, tag = 'output window, operand 0']
    %12 = vsyncpa [#allocation3], 0
    %s13 = scalar_lea.sflag [#allocation3], 1
    %14 = vsyncpa %s13, 0
    %15 = vsyncpa [#allocation6], 0
    %16 = vsyncpa [#allocation4], 0
    %s17 = scalar_lea.sflag [#allocation4], 1
    %18 = vsyncpa %s17, 0
    loop: start=0, step=1, limit=4
    $region2: #{tpu_custom_call.1} parent=1 // loop_pre_header
      _
    $region3: #{tpu_custom_call.1} parent=1 // loop_header
      %s20 = sphi 0, %s24
      %p21 = scmp.ge.s32.totalorder %s20, 4
      %s30 = sphi 0, %s32
      %s33 = sphi 0, %s30
      %s34 = sphi 0, %s33
      %s50 = sphi 0, %s34
      %s54 = sphi 0, %s54
      %s56 = sphi 0, %s54
      %s57 = sphi 0, %s56
      %s71 = sphi 0, %s57
      %s75 = sphi 0, %s75
      %s77 = sphi 0, %s75
      %s78 = sphi 0, %s77
      %s92 = sphi 0, %s78
      %s96 = sphi 0, %s96
      %s98 = sphi 0, %s96
      %s99 = sphi 0, %s98
      %s113 = sphi 0, %s99
      %s117 = sphi 0, %s117
      %s119 = sphi 0, %s117
      %s120 = sphi 0, %s119
      %s134 = sphi 0, %s120
      %s138 = sphi 0, %s138
      %s140 = sphi 0, %s138
      %s141 = sphi 0, %s140
      %s155 = sphi 0, %s141
      %s159 = sphi 0, %s159
      %s161 = sphi 0, %s159
      %s162 = sphi 0, %s161
      %s176 = sphi 0, %s162
      %s182 = sphi 0, %s184
      %s185 = sphi 0, %s182
      %s186 = sphi 0, %s185
      %s202 = sphi 0, %s186
    $region4: #{tpu_custom_call.1} parent=1 // loop_header_branch
      %23 = sbr.rel (%p21) target = $region8
    $region5: #{tpu_custom_call.1} parent=1 // loop_body
      %s25 = ssub.s32 %s20, 1
      %s26 = ssub.s32 %s20, 2
      %s27 = sadd.s32 %s20, 1
      %s28 = ssub.s32 %s20, %s27
      %p29 = scmp.eq.s32.totalorder %s28, 0
      %s31 = sadd.s32 %s30, 1
      %s32 = scalar_select %p29, %s30, %s31
      %p35 = pneg %p29
      %p36 = scmp.eq.s32.totalorder %s20, 1
      %p37 = por %p35, %p36
      %p38 = scmp.ne.s32.totalorder %s30, %s33
      %p39 = scmp.eq.s32.totalorder %s20, 0
      %p40 = por %p38, %p39
      %p41 = scmp.ne.s32.totalorder %s30, %s33
      %p42 = scmp.eq.s32.totalorder %s25, 1
      %p43 = por %p41, %p42
      %p44 = scmp.ne.s32.totalorder %s33, %s34
      %p45 = scmp.eq.s32.totalorder %s25, 0
      %p46 = por %p44, %p45
      %p47 = scmp.ne.s32.totalorder %s33, %s34
      %p48 = scmp.eq.s32.totalorder %s26, 1
      %p49 = por %p47, %p48
      %p51 = scmp.ne.s32.totalorder %s34, %s50
      %p52 = scmp.eq.s32.totalorder %s26, 0
      %p53 = por %p51, %p52
      %s55 = sadd.s32 %s54, 1
      %p58 = scmp.eq.s32.totalorder %s20, 1
      %p59 = scmp.ne.s32.totalorder %s54, %s56
      %p60 = scmp.eq.s32.totalorder %s20, 0
      %p61 = por %p59, %p60
      %p62 = scmp.ne.s32.totalorder %s54, %s56
      %p63 = scmp.eq.s32.totalorder %s25, 1
      %p64 = por %p62, %p63
      %p65 = scmp.ne.s32.totalorder %s56, %s57
      %p66 = scmp.eq.s32.totalorder %s25, 0
      %p67 = por %p65, %p66
      %p68 = scmp.ne.s32.totalorder %s56, %s57
      %p69 = scmp.eq.s32.totalorder %s26, 1
      %p70 = por %p68, %p69
      %p72 = scmp.ne.s32.totalorder %s57, %s71
      %p73 = scmp.eq.s32.totalorder %s26, 0
      %p74 = por %p72, %p73
      %s76 = sadd.s32 %s75, 1
      %p79 = scmp.eq.s32.totalorder %s20, 1
      %p80 = scmp.ne.s32.totalorder %s75, %s77
      %p81 = scmp.eq.s32.totalorder %s20, 0
      %p82 = por %p80, %p81
      %p83 = scmp.ne.s32.totalorder %s75, %s77
      %p84 = scmp.eq.s32.totalorder %s25, 1
      %p85 = por %p83, %p84
      %p86 = scmp.ne.s32.totalorder %s77, %s78
      %p87 = scmp.eq.s32.totalorder %s25, 0
      %p88 = por %p86, %p87
      %p89 = scmp.ne.s32.totalorder %s77, %s78
      %p90 = scmp.eq.s32.totalorder %s26, 1
      %p91 = por %p89, %p90
      %p93 = scmp.ne.s32.totalorder %s78, %s92
      %p94 = scmp.eq.s32.totalorder %s26, 0
      %p95 = por %p93, %p94
      %s97 = sadd.s32 %s96, 1
      %p100 = scmp.eq.s32.totalorder %s20, 1
      %p101 = scmp.ne.s32.totalorder %s96, %s98
      %p102 = scmp.eq.s32.totalorder %s20, 0
      %p103 = por %p101, %p102
      %p104 = scmp.ne.s32.totalorder %s96, %s98
      %p105 = scmp.eq.s32.totalorder %s25, 1
      %p106 = por %p104, %p105
      %p107 = scmp.ne.s32.totalorder %s98, %s99
      %p108 = scmp.eq.s32.totalorder %s25, 0
      %p109 = por %p107, %p108
      %p110 = scmp.ne.s32.totalorder %s98, %s99
      %p111 = scmp.eq.s32.totalorder %s26, 1
      %p112 = por %p110, %p111
      %p114 = scmp.ne.s32.totalorder %s99, %s113
      %p115 = scmp.eq.s32.totalorder %s26, 0
      %p116 = por %p114, %p115
      %s118 = sadd.s32 %s117, 1
      %p121 = scmp.eq.s32.totalorder %s20, 1
      %p122 = scmp.ne.s32.totalorder %s117, %s119
      %p123 = scmp.eq.s32.totalorder %s20, 0
      %p124 = por %p122, %p123
      %p125 = scmp.ne.s32.totalorder %s117, %s119
      %p126 = scmp.eq.s32.totalorder %s25, 1
      %p127 = por %p125, %p126
      %p128 = scmp.ne.s32.totalorder %s119, %s120
      %p129 = scmp.eq.s32.totalorder %s25, 0
      %p130 = por %p128, %p129
      %p131 = scmp.ne.s32.totalorder %s119, %s120
      %p132 = scmp.eq.s32.totalorder %s26, 1
      %p133 = por %p131, %p132
      %p135 = scmp.ne.s32.totalorder %s120, %s134
      %p136 = scmp.eq.s32.totalorder %s26, 0
      %p137 = por %p135, %p136
      %s139 = sadd.s32 %s138, 1
      %p142 = scmp.eq.s32.totalorder %s20, 1
      %p143 = scmp.ne.s32.totalorder %s138, %s140
      %p144 = scmp.eq.s32.totalorder %s20, 0
      %p145 = por %p143, %p144
      %p146 = scmp.ne.s32.totalorder %s138, %s140
      %p147 = scmp.eq.s32.totalorder %s25, 1
      %p148 = por %p146, %p147
      %p149 = scmp.ne.s32.totalorder %s140, %s141
      %p150 = scmp.eq.s32.totalorder %s25, 0
      %p151 = por %p149, %p150
      %p152 = scmp.ne.s32.totalorder %s140, %s141
      %p153 = scmp.eq.s32.totalorder %s26, 1
      %p154 = por %p152, %p153
      %p156 = scmp.ne.s32.totalorder %s141, %s155
      %p157 = scmp.eq.s32.totalorder %s26, 0
      %p158 = por %p156, %p157
      %s160 = sadd.s32 %s159, 1
      %p163 = scmp.eq.s32.totalorder %s20, 1
      %p164 = scmp.ne.s32.totalorder %s159, %s161
      %p165 = scmp.eq.s32.totalorder %s20, 0
      %p166 = por %p164, %p165
      %p167 = scmp.ne.s32.totalorder %s159, %s161
      %p168 = scmp.eq.s32.totalorder %s25, 1
      %p169 = por %p167, %p168
      %p170 = scmp.ne.s32.totalorder %s161, %s162
      %p171 = scmp.eq.s32.totalorder %s25, 0
      %p172 = por %p170, %p171
      %p173 = scmp.ne.s32.totalorder %s161, %s162
      %p174 = scmp.eq.s32.totalorder %s26, 1
      %p175 = por %p173, %p174
      %p177 = scmp.ne.s32.totalorder %s162, %s176
      %p178 = scmp.eq.s32.totalorder %s26, 0
      %p179 = por %p177, %p178
      %s180 = ssub.s32 %s20, %s27
      %p181 = scmp.eq.s32.totalorder %s180, 0
      %s183 = sadd.s32 %s182, 1
      %s184 = scalar_select %p181, %s182, %s183
      %p187 = pneg %p181
      %p188 = scmp.eq.s32.totalorder %s20, 1
      %p189 = por %p187, %p188
      %p190 = scmp.ne.s32.totalorder %s182, %s185
      %p191 = scmp.eq.s32.totalorder %s20, 0
      %p192 = por %p190, %p191
      %p193 = scmp.ne.s32.totalorder %s182, %s185
      %p194 = scmp.eq.s32.totalorder %s25, 1
      %p195 = por %p193, %p194
      %p196 = scmp.ne.s32.totalorder %s185, %s186
      %p197 = scmp.eq.s32.totalorder %s25, 0
      %p198 = por %p196, %p197
      %p199 = scmp.ne.s32.totalorder %s185, %s186
      %p200 = scmp.eq.s32.totalorder %s26, 1
      %p201 = por %p199, %p200
      %p203 = scmp.ne.s32.totalorder %s186, %s202
      %p204 = scmp.eq.s32.totalorder %s26, 0
      %p205 = por %p203, %p204
      %p206 = scmp.le.s32.totalorder 1, %s20
      %p207 = scmp.lt.s32.totalorder %s20, 3
      %p208 = pnand %p206, %p207
      %p209 = pneg %p208
      // Predicated region
      $region9: #{tpu_custom_call.1} parent=5 // pred_check
        _
      $region10: #{tpu_custom_call.1} parent=5 // pred_check_branch
        %211 = sbr.rel (%p208) target = $region12
      $region11: #{tpu_custom_call.1} parent=5 // pred_region
        %s212 = ssub.s32 %s20, 1
        // Predicated region
        $region13: #{tpu_custom_call.1} parent=11 // pred_check
          %p213 = pneg %p67
        $region14: #{tpu_custom_call.1} parent=11 // pred_check_branch
          %215 = sbr.rel (%p213) target = $region16
        $region15: #{tpu_custom_call.1} parent=11 // pred_region
          %217 = vsyncadd [#allocation6], 0
          %s218 = sshll.u32 %s1, 4
          %s219 = int_to_ptr.hbm [resolvable:$true] %s218
          %s220 = sshll.u32 [#allocation5], 4
          %s221 = int_to_ptr.vmem [resolvable:$true] %s220
          %226 = dma.hbm_to_vmem [thread:$0]  %s219, 1024, %s221, [#allocation6], 64, 64, 4
        $region16: #{tpu_custom_call.1} parent=11 // pred_fallthru
          _
        // Predicated region
        $region17: #{tpu_custom_call.1} parent=11 // pred_check
          %p227 = pneg %p88
        $region18: #{tpu_custom_call.1} parent=11 // pred_check_branch
          %229 = sbr.rel (%p227) target = $region20
        $region19: #{tpu_custom_call.1} parent=11 // pred_region
          _
        $region20: #{tpu_custom_call.1} parent=11 // pred_fallthru
          _
        // Predicated region
        $region21: #{tpu_custom_call.1} parent=11 // pred_check
          %p230 = pneg %p109
        $region22: #{tpu_custom_call.1} parent=11 // pred_check_branch
          %232 = sbr.rel (%p230) target = $region24
        $region23: #{tpu_custom_call.1} parent=11 // pred_region
          _
        $region24: #{tpu_custom_call.1} parent=11 // pred_fallthru
          _
        // Predicated region
        $region25: #{tpu_custom_call.1} parent=11 // pred_check
          %p233 = pneg %p130
        $region26: #{tpu_custom_call.1} parent=11 // pred_check_branch
          %235 = sbr.rel (%p233) target = $region28
        $region27: #{tpu_custom_call.1} parent=11 // pred_region
          %237 = vsyncadd [#allocation6], 0
          %s238 = sshll.u32 %s4, 4
          %s239 = int_to_ptr.hbm [resolvable:$true] %s238
          %s240 = sshll.u32 [#allocation7], 4
          %s241 = int_to_ptr.vmem [resolvable:$true] %s240
          %246 = dma.hbm_to_vmem [thread:$0]  %s239, 1024, %s241, [#allocation6], 64, 64, 4
        $region28: #{tpu_custom_call.1} parent=11 // pred_fallthru
          _
        // Predicated region
        $region29: #{tpu_custom_call.1} parent=11 // pred_check
          %p247 = pneg %p151
        $region30: #{tpu_custom_call.1} parent=11 // pred_check_branch
          %249 = sbr.rel (%p247) target = $region32
        $region31: #{tpu_custom_call.1} parent=11 // pred_region
          _
        $region32: #{tpu_custom_call.1} parent=11 // pred_fallthru
          _
        // Predicated region
        $region33: #{tpu_custom_call.1} parent=11 // pred_check
          %p250 = pneg %p172
        $region34: #{tpu_custom_call.1} parent=11 // pred_check_branch
          %252 = sbr.rel (%p250) target = $region36
        $region35: #{tpu_custom_call.1} parent=11 // pred_region
          _
        $region36: #{tpu_custom_call.1} parent=11 // pred_fallthru
          _
      $region12: #{tpu_custom_call.1} parent=5 // pred_fallthru
        _
      %p253 = scmp.lt.s32.totalorder %s20, 2
      // Predicated region
      $region37: #{tpu_custom_call.1} parent=5 // pred_check
        %p254 = pneg %p253
      $region38: #{tpu_custom_call.1} parent=5 // pred_check_branch
        %256 = sbr.rel (%p254) target = $region40
      $region39: #{tpu_custom_call.1} parent=5 // pred_region
        // Predicated region
        $region41: #{tpu_custom_call.1} parent=39 // pred_check
          %p257 = pneg %p40
        $region42: #{tpu_custom_call.1} parent=39 // pred_check_branch
          %259 = sbr.rel (%p257) target = $region44
        $region43: #{tpu_custom_call.1} parent=39 // pred_region
          %s260 = sand.u32 %s30, 1
          %s261 = scalar_lea.sflag [#allocation3], %s260
          %s262 = sand.u32 %s30, 1
          %s263 = smul.addr %s262, 32
          %s264 = scalar_lea.vmem [#allocation2], %s263
          %s265 = smul.u32 2, %s20
          %267 = vsyncadd %s261, 0
          %s268 = smul.addr %s265, 2
          %s269 = smul.addr %s268, 8
          %s270 = scalar_lea.hbm %s0, %s269
          %s271 = sshll.u32 %s270, 4
          %s272 = int_to_ptr.hbm [resolvable:$true] %s271
          %s273 = sshll.u32 %s264, 4
          %s274 = int_to_ptr.vmem [resolvable:$true] %s273
          %279 = dma.hbm_to_vmem [thread:$0]  %s272, 512, %s274, %s261, 128, 128, 8
        $region44: #{tpu_custom_call.1} parent=39 // pred_fallthru
          _
      $region40: #{tpu_custom_call.1} parent=5 // pred_fallthru
        _
      %p280 = scmp.le.s32.totalorder 1, %s20
      %p281 = scmp.lt.s32.totalorder %s20, 3
      %p282 = pnand %p280, %p281
      %p283 = pneg %p282
      // Predicated region
      $region45: #{tpu_custom_call.1} parent=5 // pred_check
        _
      $region46: #{tpu_custom_call.1} parent=5 // pred_check_branch
        %285 = sbr.rel (%p282) target = $region48
      $region47: #{tpu_custom_call.1} parent=5 // pred_region
        %s286 = ssub.s32 %s20, 1
        %s287 = sand.u32 %s33, 1
        %s288 = scalar_lea.sflag [#allocation3], %s287
        %s289 = sand.u32 %s33, 1
        %s290 = smul.addr %s289, 32
        %s291 = scalar_lea.vmem [#allocation2], %s290
        // Predicated region
        $region49: #{tpu_custom_call.1} parent=47 // pred_check
          %p292 = pneg %p46
        $region50: #{tpu_custom_call.1} parent=47 // pred_check_branch
          %294 = sbr.rel (%p292) target = $region52
        $region51: #{tpu_custom_call.1} parent=47 // pred_region
          %296 = dma.done %s288, 512
        $region52: #{tpu_custom_call.1} parent=47 // pred_fallthru
          _
        // Predicated region
        $region53: #{tpu_custom_call.1} parent=47 // pred_check
          %p297 = pneg %p67
        $region54: #{tpu_custom_call.1} parent=47 // pred_check_branch
          %299 = sbr.rel (%p297) target = $region56
        $region55: #{tpu_custom_call.1} parent=47 // pred_region
          %301 = dma.done [#allocation6], 1024
        $region56: #{tpu_custom_call.1} parent=47 // pred_fallthru
          _
        // Predicated region
        $region57: #{tpu_custom_call.1} parent=47 // pred_check
          %p302 = pneg %p130
        $region58: #{tpu_custom_call.1} parent=47 // pred_check_branch
          %304 = sbr.rel (%p302) target = $region60
        $region59: #{tpu_custom_call.1} parent=47 // pred_region
          %306 = dma.done [#allocation6], 1024
        $region60: #{tpu_custom_call.1} parent=47 // pred_fallthru
          _
        %s307 = sand.u32 %s33, 1
        %s308 = scalar_lea.sflag [#allocation3], %s307
        %s309 = sand.u32 %s33, 1
        %s310 = smul.addr %s309, 32
        %s311 = scalar_lea.vmem [#allocation2], %s310
        %p312 = pneg %p46
        %p313 = pneg %p43
        %p314 = pneg %p67
        %p315 = pneg %p64
        %p316 = pneg %p88
        %p317 = pneg %p85
        %p318 = pneg %p109
        %p319 = pneg %p106
        %p320 = pneg %p130
        %p321 = pneg %p127
        %p322 = pneg %p151
        %p323 = pneg %p148
        %p324 = pneg %p172
        %p325 = pneg %p169
        %p326 = pneg %p198
        %p327 = pneg %p195
        %s328 = sand.u32 %s185, 1
        %s329 = scalar_lea.sflag [#allocation4], %s328
        %s330 = sand.u32 %s185, 1
        %s331 = smul.addr %s330, 32
        %s332 = scalar_lea.vmem [#allocation8], %s331
        %s333 = smul.u32 2, %s25
        %s334 = smul.u32 2, %s25
        %v335 = vld [vmem:[%s291] sm:$0xff]
        %v336 = vld [vmem:[%s291 + $0x8] sm:$0xff]
        %v337 = vld [vmem:[%s291 + $0x10] sm:$0xff]
        %v338 = vld [vmem:[%s291 + $0x18] sm:$0xff]
        %v339 = vpack.c.bf16 %v336, %v335
        %v340 = vpack.c.bf16 %v338, %v337
        %v341 = vld [vmem:[#allocation5] sm:$0xf]
        %v342 = vld [vmem:[#allocation5 + $0x4] sm:$0xf]
        %v343 = vld [vmem:[#allocation5 + $0x8] sm:$0xf]
        %v344 = vld [vmem:[#allocation5 + $0xc] sm:$0xf]
        %v345 = vld [vmem:[#allocation5 + $0x10] sm:$0xf]
        %v346 = vld [vmem:[#allocation5 + $0x14] sm:$0xf]
        %v347 = vld [vmem:[#allocation5 + $0x18] sm:$0xf]
        %v348 = vld [vmem:[#allocation5 + $0x1c] sm:$0xf]
        %v349 = vld [vmem:[#allocation5 + $0x20] sm:$0xf]
        %v350 = vld [vmem:[#allocation5 + $0x24] sm:$0xf]
        %v351 = vld [vmem:[#allocation5 + $0x28] sm:$0xf]
        %v352 = vld [vmem:[#allocation5 + $0x2c] sm:$0xf]
        %v353 = vld [vmem:[#allocation5 + $0x30] sm:$0xf]
        %v354 = vld [vmem:[#allocation5 + $0x34] sm:$0xf]
        %v355 = vld [vmem:[#allocation5 + $0x38] sm:$0xf]
        %v356 = vld [vmem:[#allocation5 + $0x3c] sm:$0xf]
        %v373 = vunpack.c.l.b16 %v341
        %v374 = vunpack.c.l.b16 %v342
        %v375 = vunpack.c.l.b16 %v343
        %v376 = vunpack.c.l.b16 %v344
        %v377 = vunpack.c.l.b16 %v345
        %v378 = vunpack.c.l.b16 %v346
        %v379 = vunpack.c.l.b16 %v347
        %v380 = vunpack.c.l.b16 %v348
        %v381 = vunpack.c.l.b16 %v349
        %v382 = vunpack.c.l.b16 %v350
        %v383 = vunpack.c.l.b16 %v351
        %v384 = vunpack.c.l.b16 %v352
        %v385 = vunpack.c.l.b16 %v353
        %v386 = vunpack.c.l.b16 %v354
        %v387 = vunpack.c.l.b16 %v355
        %v388 = vunpack.c.l.b16 %v356
        %v389 = vpack.c.b16 %v374, %v373
        %v390 = vpack.c.b16 %v376, %v375
        %v391 = vpack.c.b16 %v378, %v377
        %v392 = vpack.c.b16 %v380, %v379
        %v393 = vpack.c.b16 %v382, %v381
        %v394 = vpack.c.b16 %v384, %v383
        %v395 = vpack.c.b16 %v386, %v385
        %v396 = vpack.c.b16 %v388, %v387
        %405 = vmatpush.bf16.msra.mxu0 %v396
        %406 = vmatpush.bf16.msra.mxu0 %v395
        %407 = vmatpush.bf16.msra.mxu0 %v394
        %408 = vmatpush.bf16.msra.mxu0 %v393
        %409 = vmatpush.bf16.msra.mxu0 %v392
        %410 = vmatpush.bf16.msra.mxu0 %v391
        %411 = vmatpush.bf16.msra.mxu0 %v390
        %412 = vmatpush.bf16.msra.mxu0 %v389
        %413 = vmatmul.bf16.gmra.mxu0 %v339
        %v414 = vpop.f32.mrf.mxu0
        %v415 = vadd.f32 0.0, %v414
        %v416 = vpop.f32.mrf.mxu0
        %v417 = vadd.f32 0.0, %v416
        %418 = vmatmul.bf16.gmra.mxu0 %v340
        %v419 = vpop.f32.mrf.mxu0
        %v420 = vadd.f32 0.0, %v419
        %v421 = vpop.f32.mrf.mxu0
        %v422 = vadd.f32 0.0, %v421
        %423 = vdwg.mxu0
        %v424 = vadd.f32 %v415, %v417
        %v425 = vrot.slane %v424, 4
        %v426 = vadd.f32 %v424, %v425
        %v427 = vrot.slane %v426, 2
        %v428 = vadd.f32 %v426, %v427
        %v429 = vrot.slane %v428, 1
        %v430 = vadd.f32 %v428, %v429
        %v431 = vadd.f32 %v420, %v422
        %v432 = vrot.slane %v431, 4
        %v433 = vadd.f32 %v431, %v432
        %v434 = vrot.slane %v433, 2
        %v435 = vadd.f32 %v433, %v434
        %v436 = vrot.slane %v435, 1
        %v437 = vadd.f32 %v435, %v436
        %v438 = vrcp.pop 16.0
        %v439 = vmul.f32 16.0, %v438
        %v440 = vsub.f32 1.0, %v439
        %v441 = vmul.f32 %v438, %v440
        %v442 = vadd.f32 %v438, %v441
        %vm443 = vweird.f32 %v438
        %v444 = vsel %vm443, %v438, %v442
        %v445 = vmul.f32 %v430, %v444
        %v446 = vmul.f32 %v437, %v444
        %v447 = vmul.f32 %v415, %v415
        %v448 = vmul.f32 %v417, %v417
        %v449 = vmul.f32 %v420, %v420
        %v450 = vmul.f32 %v422, %v422
        %v451 = vadd.f32 %v447, %v448
        %v452 = vrot.slane %v451, 4
        %v453 = vadd.f32 %v451, %v452
        %v454 = vrot.slane %v453, 2
        %v455 = vadd.f32 %v453, %v454
        %v456 = vrot.slane %v455, 1
        %v457 = vadd.f32 %v455, %v456
        %v458 = vadd.f32 %v449, %v450
        %v459 = vrot.slane %v458, 4
        %v460 = vadd.f32 %v458, %v459
        %v461 = vrot.slane %v460, 2
        %v462 = vadd.f32 %v460, %v461
        %v463 = vrot.slane %v462, 1
        %v464 = vadd.f32 %v462, %v463
        %v465 = vmul.f32 %v457, %v444
        %v466 = vmul.f32 %v464, %v444
        %v467 = vmul.f32 %v445, %v445
        %v468 = vmul.f32 %v446, %v446
        %v469 = vsub.f32 %v465, %v467
        %v470 = vsub.f32 %v466, %v468
        %v471 = vmax.f32 %v469, 0.0
        %v472 = vmax.f32 %v470, 0.0
        %v473 = vld [vmem:[%s2] sm:$0x1]
        %v474 = vadd.f32 %v471, 1e-05
        %v475 = vadd.f32 %v472, 1e-05
        %v476 = vrsqrt.pop %v474
        %v477 = vmul.f32 %v476, %v474
        %v478 = vmul.f32 %v477, %v476
        %v479 = vmul.f32 0.5, %v478
        %v480 = vsub.f32 1.5, %v479
        %v481 = vmul.f32 %v476, %v480
        %vm482 = vweird.f32 %v474
        %vm483 = vweird.f32 %v476
        %vm484 = vmor %vm482, %vm483
        %v485 = vsel %vm484, %v476, %v481
        %v486 = vrsqrt.pop %v475
        %v487 = vmul.f32 %v486, %v475
        %v488 = vmul.f32 %v487, %v486
        %v489 = vmul.f32 0.5, %v488
        %v490 = vsub.f32 1.5, %v489
        %v491 = vmul.f32 %v486, %v490
        %vm492 = vweird.f32 %v475
        %vm493 = vweird.f32 %v486
        %vm494 = vmor %vm492, %vm493
        %v495 = vsel %vm494, %v486, %v491
        %v496 = vmul.f32 %v473, %v485
        %v497 = vmul.f32 %v473, %v495
        %v498 = vld [vmem:[%s3] sm:$0x1]
        %v499 = vmul.f32 %v445, %v496
        %v500 = vmul.f32 %v446, %v497
        %v501 = vsub.f32 %v498, %v499
        %v502 = vsub.f32 %v498, %v500
        %v505 = vperm.slane %v496, 0
        %v506 = vperm.slane %v497, 0
        %v509 = vmul.f32 %v415, %v505
        %v510 = vmul.f32 %v417, %v505
        %v511 = vmul.f32 %v420, %v506
        %v512 = vmul.f32 %v422, %v506
        %v515 = vperm.slane %v501, 0
        %v516 = vperm.slane %v502, 0
        %v519 = vadd.f32 %v509, %v515
        %v520 = vadd.f32 %v510, %v515
        %v521 = vadd.f32 %v511, %v516
        %v522 = vadd.f32 %v512, %v516
        %v523 = vmax.f32 %v519, 0.0
        %v524 = vmax.f32 %v520, 0.0
        %v525 = vmax.f32 %v521, 0.0
        %v526 = vmax.f32 %v522, 0.0
        %v527 = vpack.c.bf16 %v523, %v523
        %v528 = vpack.c.bf16 %v524, %v524
        %v529 = vpack.c.bf16 %v525, %v525
        %v530 = vpack.c.bf16 %v526, %v526
        %v531 = vld [vmem:[#allocation7] sm:$0xf]
        %v532 = vld [vmem:[#allocation7 + $0x4] sm:$0xf]
        %v533 = vld [vmem:[#allocation7 + $0x8] sm:$0xf]
        %v534 = vld [vmem:[#allocation7 + $0xc] sm:$0xf]
        %v535 = vld [vmem:[#allocation7 + $0x10] sm:$0xf]
        %v536 = vld [vmem:[#allocation7 + $0x14] sm:$0xf]
        %v537 = vld [vmem:[#allocation7 + $0x18] sm:$0xf]
        %v538 = vld [vmem:[#allocation7 + $0x1c] sm:$0xf]
        %v539 = vld [vmem:[#allocation7 + $0x20] sm:$0xf]
        %v540 = vld [vmem:[#allocation7 + $0x24] sm:$0xf]
        %v541 = vld [vmem:[#allocation7 + $0x28] sm:$0xf]
        %v542 = vld [vmem:[#allocation7 + $0x2c] sm:$0xf]
        %v543 = vld [vmem:[#allocation7 + $0x30] sm:$0xf]
        %v544 = vld [vmem:[#allocation7 + $0x34] sm:$0xf]
        %v545 = vld [vmem:[#allocation7 + $0x38] sm:$0xf]
        %v546 = vld [vmem:[#allocation7 + $0x3c] sm:$0xf]
        %v551 = vunpack.c.l.b16 %v527
        %v552 = vunpack.c.l.b16 %v528
        %v553 = vunpack.c.l.b16 %v529
        %v554 = vunpack.c.l.b16 %v530
        %v555 = vpack.c.b16 %v552, %v551
        %v556 = vpack.c.b16 %v554, %v553
        %v575 = vunpack.c.l.b16 %v531
        %v576 = vunpack.c.l.b16 %v532
        %v577 = vunpack.c.l.b16 %v533
        %v578 = vunpack.c.l.b16 %v534
        %v579 = vunpack.c.l.b16 %v535
        %v580 = vunpack.c.l.b16 %v536
        %v581 = vunpack.c.l.b16 %v537
        %v582 = vunpack.c.l.b16 %v538
        %v583 = vunpack.c.l.b16 %v539
        %v584 = vunpack.c.l.b16 %v540
        %v585 = vunpack.c.l.b16 %v541
        %v586 = vunpack.c.l.b16 %v542
        %v587 = vunpack.c.l.b16 %v543
        %v588 = vunpack.c.l.b16 %v544
        %v589 = vunpack.c.l.b16 %v545
        %v590 = vunpack.c.l.b16 %v546
        %v591 = vpack.c.b16 %v576, %v575
        %v592 = vpack.c.b16 %v578, %v577
        %v593 = vpack.c.b16 %v580, %v579
        %v594 = vpack.c.b16 %v582, %v581
        %v595 = vpack.c.b16 %v584, %v583
        %v596 = vpack.c.b16 %v586, %v585
        %v597 = vpack.c.b16 %v588, %v587
        %v598 = vpack.c.b16 %v590, %v589
        %607 = vmatpush.bf16.msra.mxu0 %v598
        %608 = vmatpush.bf16.msra.mxu0 %v597
        %609 = vmatpush.bf16.msra.mxu0 %v596
        %610 = vmatpush.bf16.msra.mxu0 %v595
        %611 = vmatpush.bf16.msra.mxu0 %v594
        %612 = vmatpush.bf16.msra.mxu0 %v593
        %613 = vmatpush.bf16.msra.mxu0 %v592
        %614 = vmatpush.bf16.msra.mxu0 %v591
        %615 = vmatmul.bf16.gmra.mxu0 %v555
        %v616 = vpop.f32.mrf.mxu0
        %v617 = vadd.f32 0.0, %v616
        %v618 = vpop.f32.mrf.mxu0
        %v619 = vadd.f32 0.0, %v618
        %620 = vmatmul.bf16.gmra.mxu0 %v556
        %v621 = vpop.f32.mrf.mxu0
        %v622 = vadd.f32 0.0, %v621
        %v623 = vpop.f32.mrf.mxu0
        %v624 = vadd.f32 0.0, %v623
        %625 = vdwg.mxu0
        %v626 = vadd.f32 %v617, %v619
        %v627 = vrot.slane %v626, 4
        %v628 = vadd.f32 %v626, %v627
        %v629 = vrot.slane %v628, 2
        %v630 = vadd.f32 %v628, %v629
        %v631 = vrot.slane %v630, 1
        %v632 = vadd.f32 %v630, %v631
        %v633 = vadd.f32 %v622, %v624
        %v634 = vrot.slane %v633, 4
        %v635 = vadd.f32 %v633, %v634
        %v636 = vrot.slane %v635, 2
        %v637 = vadd.f32 %v635, %v636
        %v638 = vrot.slane %v637, 1
        %v639 = vadd.f32 %v637, %v638
        %v640 = vmul.f32 %v632, %v444
        %v641 = vmul.f32 %v639, %v444
        %v642 = vmul.f32 %v617, %v617
        %v643 = vmul.f32 %v619, %v619
        %v644 = vmul.f32 %v622, %v622
        %v645 = vmul.f32 %v624, %v624
        %v646 = vadd.f32 %v642, %v643
        %v647 = vrot.slane %v646, 4
        %v648 = vadd.f32 %v646, %v647
        %v649 = vrot.slane %v648, 2
        %v650 = vadd.f32 %v648, %v649
        %v651 = vrot.slane %v650, 1
        %v652 = vadd.f32 %v650, %v651
        %v653 = vadd.f32 %v644, %v645
        %v654 = vrot.slane %v653, 4
        %v655 = vadd.f32 %v653, %v654
        %v656 = vrot.slane %v655, 2
        %v657 = vadd.f32 %v655, %v656
        %v658 = vrot.slane %v657, 1
        %v659 = vadd.f32 %v657, %v658
        %v660 = vmul.f32 %v652, %v444
        %v661 = vmul.f32 %v659, %v444
        %v662 = vmul.f32 %v640, %v640
        %v663 = vmul.f32 %v641, %v641
        %v664 = vsub.f32 %v660, %v662
        %v665 = vsub.f32 %v661, %v663
        %v666 = vmax.f32 %v664, 0.0
        %v667 = vmax.f32 %v665, 0.0
        %v668 = vld [vmem:[%s5] sm:$0x1]
        %v669 = vadd.f32 %v666, 1e-05
        %v670 = vadd.f32 %v667, 1e-05
        %v671 = vrsqrt.pop %v669
        %v672 = vmul.f32 %v671, %v669
        %v673 = vmul.f32 %v672, %v671
        %v674 = vmul.f32 0.5, %v673
        %v675 = vsub.f32 1.5, %v674
        %v676 = vmul.f32 %v671, %v675
        %vm677 = vweird.f32 %v669
        %vm678 = vweird.f32 %v671
        %vm679 = vmor %vm677, %vm678
        %v680 = vsel %vm679, %v671, %v676
        %v681 = vrsqrt.pop %v670
        %v682 = vmul.f32 %v681, %v670
        %v683 = vmul.f32 %v682, %v681
        %v684 = vmul.f32 0.5, %v683
        %v685 = vsub.f32 1.5, %v684
        %v686 = vmul.f32 %v681, %v685
        %vm687 = vweird.f32 %v670
        %vm688 = vweird.f32 %v681
        %vm689 = vmor %vm687, %vm688
        %v690 = vsel %vm689, %v681, %v686
        %v691 = vmul.f32 %v668, %v680
        %v692 = vmul.f32 %v668, %v690
        %v693 = vld [vmem:[%s6] sm:$0x1]
        %v694 = vmul.f32 %v640, %v691
        %v695 = vmul.f32 %v641, %v692
        %v696 = vsub.f32 %v693, %v694
        %v697 = vsub.f32 %v693, %v695
        %v700 = vperm.slane %v691, 0
        %v701 = vperm.slane %v692, 0
        %v704 = vmul.f32 %v617, %v700
        %v705 = vmul.f32 %v619, %v700
        %v706 = vmul.f32 %v622, %v701
        %v707 = vmul.f32 %v624, %v701
        %v710 = vperm.slane %v696, 0
        %v711 = vperm.slane %v697, 0
        %v714 = vadd.f32 %v704, %v710
        %v715 = vadd.f32 %v705, %v710
        %v716 = vadd.f32 %v706, %v711
        %v717 = vadd.f32 %v707, %v711
        %v718 = vadd.f32 %v714, %v335
        %v719 = vadd.f32 %v715, %v336
        %v720 = vadd.f32 %v716, %v337
        %v721 = vadd.f32 %v717, %v338
        %v722 = vmax.f32 %v718, 0.0
        %v723 = vmax.f32 %v719, 0.0
        %v724 = vmax.f32 %v720, 0.0
        %v725 = vmax.f32 %v721, 0.0
        %726 = vst [vmem:[%s332] sm:$0xff] %v722
        %727 = vst [vmem:[%s332 + $0x8] sm:$0xff] %v723
        %728 = vst [vmem:[%s332 + $0x10] sm:$0xff] %v724
        %729 = vst [vmem:[%s332 + $0x18] sm:$0xff] %v725
        %s730 = sand.u32 %s185, 1
        %s731 = scalar_lea.sflag [#allocation4], %s730
        %s732 = sand.u32 %s185, 1
        %s733 = smul.addr %s732, 32
        %s734 = scalar_lea.vmem [#allocation8], %s733
        // Predicated region
        $region61: #{tpu_custom_call.1} parent=47 // pred_check
          %p735 = pneg %p195
        $region62: #{tpu_custom_call.1} parent=47 // pred_check_branch
          %737 = sbr.rel (%p735) target = $region64
        $region63: #{tpu_custom_call.1} parent=47 // pred_region
          %s738 = smul.u32 2, %s25
          %740 = vsyncadd %s731, 0
          %s741 = smul.addr %s738, 2
          %s742 = smul.addr %s741, 8
          %s743 = scalar_lea.hbm %s7, %s742
          %s744 = sshll.u32 %s734, 4
          %s745 = int_to_ptr.vmem [resolvable:$true] %s744
          %s746 = sshll.u32 %s743, 4
          %s747 = int_to_ptr.hbm [resolvable:$true] %s746
          %752 = dma.vmem_to_hbm [thread:$0]  %s745, 512, %s747, %s731, 128, 128, 8
        $region64: #{tpu_custom_call.1} parent=47 // pred_fallthru
          _
      $region48: #{tpu_custom_call.1} parent=5 // pred_fallthru
        _
      %p753 = scmp.le.s32.totalorder 2, %s20
      // Predicated region
      $region65: #{tpu_custom_call.1} parent=5 // pred_check
        %p754 = pneg %p753
      $region66: #{tpu_custom_call.1} parent=5 // pred_check_branch
        %756 = sbr.rel (%p754) target = $region68
      $region67: #{tpu_custom_call.1} parent=5 // pred_region
        %s757 = ssub.s32 %s20, 2
        // Predicated region
        $region69: #{tpu_custom_call.1} parent=67 // pred_check
          %p758 = pneg %p201
        $region70: #{tpu_custom_call.1} parent=67 // pred_check_branch
          %760 = sbr.rel (%p758) target = $region72
        $region71: #{tpu_custom_call.1} parent=67 // pred_region
          %s761 = sand.u32 %s186, 1
          %s762 = scalar_lea.sflag [#allocation4], %s761
          %s763 = sand.u32 %s186, 1
          %s764 = smul.addr %s763, 32
          %s765 = scalar_lea.vmem [#allocation8], %s764
          %767 = dma.done %s762, 512
        $region72: #{tpu_custom_call.1} parent=67 // pred_fallthru
          _
      $region68: #{tpu_custom_call.1} parent=5 // pred_fallthru
        _
    $region6: #{tpu_custom_call.1} parent=1 // loop_footer
      %s24 = sadd.s32 1, %s20
    $region7: #{tpu_custom_call.1} parent=1 // loop_footer_branch
      %19 = sbr.rel target = $region3
    $region8: #{tpu_custom_call.1} parent=1 // loop_exit
      _
    %768 = vsyncpa [#allocation3], 1
    %s769 = scalar_lea.sflag [#allocation3], 1
    %770 = vsyncpa %s769, 1
    %771 = vsyncpa [#allocation6], 1
    %772 = vsyncpa [#allocation4], 1
    %s773 = scalar_lea.sflag [#allocation4], 1
    %774 = vsyncpa %s773, 1

</llo_original>
